<compile_context>
chip_gen: v7x
topology: tpu7x:2x2x1
jax: 0.10.0
libtpu: 0.0.40
codegen_flags: <defaults>
</compile_context>

<pallas_src>
import jax
import jax.numpy as jnp
from jax import lax
from jax.experimental import pallas as pl
from jax.experimental.pallas import tpu as pltpu


def make_lstm_kernel(num_layers: int, hidden: int, seq_len: int):
    """Builds a Pallas kernel running `num_layers` LSTM layers over a sequence."""
    L, H, T = num_layers, hidden, seq_len
    bf16 = jnp.bfloat16

    def kernel(x_ref, h0_ref, c0_ref, *rest):
        # rest layout:
        #   [0] wih0  (D, 4H)    layer-0 input weights
        #   [1] whh0  (H, 4H)    layer-0 recurrent weights
        #   [2] b0    (1, 4H)    layer-0 bias (b_ih + b_hh)
        #   then per layer l=1..L-1:  w_cat_l (2H, 4H), b_l (1, 4H)
        #   last: o_ref (T, H)
        wih0_ref, whh0_ref, b0_ref = rest[0], rest[1], rest[2]
        w_cat_refs = [rest[3 + 2 * (l - 1)] for l in range(1, L)]
        b_refs = [rest[4 + 2 * (l - 1)] for l in range(1, L)]
        o_ref = rest[3 + 2 * (L - 1)]

        # ---- layer-0 input projection hoisted off the recurrence ----
        # One batched (T, D) @ (D, 4H) bf16 MXU matmul (f32 accumulate) + bias.
        pre0 = (jnp.dot(x_ref[...].astype(bf16), wih0_ref[...].astype(bf16),
                        preferred_element_type=jnp.float32)
                + b0_ref[...])                               # (T, 4H) f32

        # ---- hoist small recurrent weights as bf16 MXU operands ----
        whh0 = whh0_ref[...].astype(bf16)                    # (H, 4H)
        w_cat = [r[...].astype(bf16) for r in w_cat_refs]    # (2H, 4H) each
        bias = [r[...] for r in b_refs]                      # (1, 4H) f32

        # ---- lane constants for the single-tanh gate nonlinearity ----
        # sigmoid(x) = 0.5*tanh(0.5*x) + 0.5 on i/f/o lanes; tanh(x) on g lanes.
        # Built exactly once (JAX does not CSE broadcast_in_dim).
        half = jnp.full((1, H), 0.5, jnp.float32)
        one = jnp.full((1, H), 1.0, jnp.float32)
        zero = jnp.zeros((1, H), jnp.float32)
        gscale = jnp.concatenate([half, half, one, half], axis=-1)   # (1, 4H)
        goffs = jnp.concatenate([half, half, zero, half], axis=-1)   # (1, 4H)

        def cell(gates, c):
            # gates: (1, 4H) f32. One full-width tanh + 2 cheap VPU fixups.
            act = gscale * jnp.tanh(gates * gscale) + goffs
            i = act[:, 0:H]
            f = act[:, H:2 * H]
            g = act[:, 2 * H:3 * H]
            o = act[:, 3 * H:4 * H]
            c_new = f * c + i * g
            h_new = o * jnp.tanh(c_new)
            return h_new, c_new

        # Per-layer carried state (f32), initialized from the learned h0/c0.
        h = [h0_ref[pl.ds(l, 1), :] for l in range(L)]   # each (1, H)
        c = [c0_ref[pl.ds(l, 1), :] for l in range(L)]

        out_rows = [None] * T

        # ---- wavefront: diagonal d runs layer l at timestep t = d - l ----
        # All layers in one diagonal read only the previous diagonal's state,
        # so their serial chains overlap on MXU/EUP/VPU.
        for d in range(T + L - 1):
            new_h = list(h)
            new_c = list(c)
            for l in range(L):
                t = d - l
                if t < 0 or t >= T:
                    continue                            # static edge guard
                if l == 0:
                    gates = pre0[t:t + 1, :] + jnp.dot(
                        h[0].astype(bf16), whh0,
                        preferred_element_type=jnp.float32)
                else:
                    # single K=2H dot instead of two K=H dots + add
                    hh = jnp.concatenate([h[l - 1], h[l]], axis=-1)  # (1, 2H)
                    gates = (jnp.dot(hh.astype(bf16), w_cat[l - 1],
                                     preferred_element_type=jnp.float32)
                             + bias[l - 1])
                h_new, c_new = cell(gates, c[l])
                new_h[l] = h_new
                new_c[l] = c_new
                if l == L - 1:
                    out_rows[t] = h_new
            h, c = new_h, new_c

        # Single batched (T, H) writeback (avoids T masked row stores).
        o_ref[...] = jnp.concatenate(out_rows, axis=0)

    return kernel


def recurrent_kernel_forward(x, h0, c0, params):
    """x: (T, input_size); h0/c0: (L, H); params: [(wih (in,4H), whh (H,4H), b (1,4H)), ...]"""
    T, D = x.shape
    L, H = h0.shape

    # Flatten weights; for l>0 pre-concatenate [wih; whh] -> (2H, 4H).
    flat_w = []
    for l, (wih, whh, b) in enumerate(params):
        if l == 0:
            flat_w += [wih, whh, b]
        else:
            flat_w += [jnp.concatenate([wih, whh], axis=0), b]

    vmem = pltpu.MemorySpace.VMEM
    n_inputs = 3 + len(flat_w)
    out = pl.pallas_call(
        make_lstm_kernel(L, H, T),
        out_shape=jax.ShapeDtypeStruct((T, H), jnp.float32),
        in_specs=[pl.BlockSpec(memory_space=vmem) for _ in range(n_inputs)],
        out_specs=pl.BlockSpec(memory_space=vmem),
    )(x, h0, c0, *flat_w)

    # torch nn.LSTM (batch_first=False) output shape: (seq, batch=1, hidden)
    return out.reshape(T, 1, H)


def lstm_reference(x, h0, c0, params, matmul_dtype=jnp.float32):
    """Pure-JAX reference of the same LSTM stack.

    matmul_dtype=bfloat16 mirrors the kernel's bf16-operand / f32-accumulate
    MXU matmuls (tight comparison); float32 gives the exact nn.LSTM math.
    """
    seq = x
    for l, (wih, whh, b) in enumerate(params):
        def step(carry, x_t, wih=wih, whh=whh, b=b):
            h, c = carry
            H = h.shape[0]
            gates = (jnp.dot(x_t.astype(matmul_dtype), wih.astype(matmul_dtype),
                             preferred_element_type=jnp.float32)
                     + jnp.dot(h.astype(matmul_dtype), whh.astype(matmul_dtype),
                               preferred_element_type=jnp.float32)
                     + b[0])
            i = jax.nn.sigmoid(gates[0:H])
            f = jax.nn.sigmoid(gates[H:2 * H])
            g = jnp.tanh(gates[2 * H:3 * H])
            o = jax.nn.sigmoid(gates[3 * H:4 * H])
            c = f * c + i * g
            h = o * jnp.tanh(c)
            return (h, c), h
        (_, _), seq = lax.scan(step, (h0[l], c0[l]), seq)
    return seq  # (T, H)


if __name__ == "__main__":
    # Shapes implied by the module: input_dimensions=(4, 4) -> input_size=16,
    # hidden_size=32, num_layers=2, 2-D input with d0=8 rows -> seq=8, batch=1.
    T, D, H, L = 8, 16, 32, 2

    key = jax.random.PRNGKey(0)
    keys = jax.random.split(key, 4 * L + 3)

    params = []
    kidx = 0
    for l in range(L):
        in_dim = D if l == 0 else H
        # kaiming_normal_: std = sqrt(2 / fan_in); weights stored pre-transposed (in, 4H)
        wih = jax.random.normal(keys[kidx], (in_dim, 4 * H), jnp.float32) * jnp.sqrt(2.0 / in_dim); kidx += 1
        whh = jax.random.normal(keys[kidx], (H, 4 * H), jnp.float32) * jnp.sqrt(2.0 / H); kidx += 1
        # PyTorch LSTM biases: two uniform(-1/sqrt(H), 1/sqrt(H)) vectors; fold their sum.
        bound = 1.0 / jnp.sqrt(H)
        b_ih = jax.random.uniform(keys[kidx], (4 * H,), jnp.float32, -bound, bound); kidx += 1
        b_hh = jax.random.uniform(keys[kidx], (4 * H,), jnp.float32, -bound, bound); kidx += 1
        params.append((wih, whh, (b_ih + b_hh).reshape(1, 4 * H)))

    # init_hidden(): kaiming_normal_ on (L, 1, H) -> fan_in = H
    h0 = jax.random.normal(keys[kidx], (L, H), jnp.float32) * jnp.sqrt(2.0 / H); kidx += 1
    c0 = jax.random.normal(keys[kidx], (L, H), jnp.float32) * jnp.sqrt(2.0 / H); kidx += 1

    # 2-D input (d0=T rows of input_size features)
    x = jax.random.normal(keys[kidx], (T, D), jnp.float32)

    y = recurrent_kernel_forward(x, h0, c0, params)
    y = jax.block_until_ready(y)

    # Mirror the torch `assert not torch.isnan(output).any()`.
    assert not bool(jnp.isnan(y).any())

    # Tight check vs a reference using the same bf16-operand / f32-accumulate
    # matmul numerics (validates kernel structure & gate rewrite).
    y_ref_bf16 = lstm_reference(x, h0, c0, params, jnp.bfloat16).reshape(T, 1, H)
    assert jnp.allclose(y, y_ref_bf16, rtol=2e-3, atol=2e-3), \
        float(jnp.max(jnp.abs(y - y_ref_bf16)))

    # Looser sanity check vs the exact f32 LSTM math (bf16 MXU operand rounding).
    y_ref_f32 = lstm_reference(x, h0, c0, params, jnp.float32).reshape(T, 1, H)
    assert jnp.allclose(y, y_ref_f32, rtol=5e-2, atol=5e-2), \
        float(jnp.max(jnp.abs(y - y_ref_f32)))

    print("KERNEL_OK")
</pallas_src>

<mosaic_0001>
module attributes {stable_mosaic.version = 11 : i64} {
  func.func @kernel(%arg0: memref<8x16xf32, #tpu.memory_space<vmem>>, %arg1: memref<2x32xf32, #tpu.memory_space<vmem>>, %arg2: memref<2x32xf32, #tpu.memory_space<vmem>>, %arg3: memref<16x128xf32, #tpu.memory_space<vmem>>, %arg4: memref<32x128xf32, #tpu.memory_space<vmem>>, %arg5: memref<1x128xf32, #tpu.memory_space<vmem>>, %arg6: memref<64x128xf32, #tpu.memory_space<vmem>>, %arg7: memref<1x128xf32, #tpu.memory_space<vmem>>, %arg8: memref<8x32xf32, #tpu.memory_space<vmem>>) attributes {dimension_semantics = [], scalar_prefetch = 0 : i64, scratch_operands = 0 : i64, tpu.core_type = #tpu.core_type<tc>} {
    %c0 = arith.constant 0 : index
    %c0_0 = arith.constant 0 : index
    %0 = vector.load %arg0[%c0, %c0_0] : memref<8x16xf32, #tpu.memory_space<vmem>>, vector<8x16xf32>
    %1 = arith.truncf %0 : vector<8x16xf32> to vector<8x16xbf16>
    %c0_1 = arith.constant 0 : index
    %c0_2 = arith.constant 0 : index
    %2 = vector.load %arg3[%c0_1, %c0_2] : memref<16x128xf32, #tpu.memory_space<vmem>>, vector<16x128xf32>
    %3 = arith.truncf %2 : vector<16x128xf32> to vector<16x128xbf16>
    %cst = arith.constant dense<0.000000e+00> : vector<8x128xf32>
    %4 = tpu.matmul %1, %3, %cst {dimension_numbers = #tpu.dot_dimension_numbers<[1], [0], [0], [1], [0, 0, 1, 1], [], []>} : vector<8x16xbf16>, vector<16x128xbf16>, vector<8x128xf32> -> vector<8x128xf32>
    %c0_3 = arith.constant 0 : index
    %c0_4 = arith.constant 0 : index
    %5 = vector.load %arg5[%c0_3, %c0_4] : memref<1x128xf32, #tpu.memory_space<vmem>>, vector<1x128xf32>
    %6 = vector.broadcast %5 : vector<1x128xf32> to vector<8x128xf32>
    %7 = arith.addf %4, %6 : vector<8x128xf32>
    %c0_5 = arith.constant 0 : index
    %c0_6 = arith.constant 0 : index
    %8 = vector.load %arg4[%c0_5, %c0_6] : memref<32x128xf32, #tpu.memory_space<vmem>>, vector<32x128xf32>
    %9 = arith.truncf %8 : vector<32x128xf32> to vector<32x128xbf16>
    %c0_7 = arith.constant 0 : index
    %c0_8 = arith.constant 0 : index
    %10 = vector.load %arg6[%c0_7, %c0_8] : memref<64x128xf32, #tpu.memory_space<vmem>>, vector<64x128xf32>
    %11 = arith.truncf %10 : vector<64x128xf32> to vector<64x128xbf16>
    %c0_9 = arith.constant 0 : index
    %c0_10 = arith.constant 0 : index
    %12 = vector.load %arg7[%c0_9, %c0_10] : memref<1x128xf32, #tpu.memory_space<vmem>>, vector<1x128xf32>
    %cst_11 = arith.constant 5.000000e-01 : f32
    %13 = vector.broadcast %cst_11 : f32 to vector<1x32xf32>
    %cst_12 = arith.constant 1.000000e+00 : f32
    %14 = vector.broadcast %cst_12 : f32 to vector<1x32xf32>
    %cst_13 = arith.constant 0.000000e+00 : f32
    %15 = vector.broadcast %cst_13 : f32 to vector<1x32xf32>
    %16 = tpu.concatenate %13, %13, %14, %13 in 1 : vector<1x32xf32>, vector<1x32xf32>, vector<1x32xf32>, vector<1x32xf32> -> vector<1x128xf32>
    %17 = tpu.concatenate %13, %13, %15, %13 in 1 : vector<1x32xf32>, vector<1x32xf32>, vector<1x32xf32>, vector<1x32xf32> -> vector<1x128xf32>
    %c0_14 = arith.constant 0 : index
    %c0_15 = arith.constant 0 : index
    %18 = vector.load %arg1[%c0_14, %c0_15] : memref<2x32xf32, #tpu.memory_space<vmem>>, vector<1x32xf32>
    %c1 = arith.constant 1 : index
    %c0_16 = arith.constant 0 : index
    %19 = vector.load %arg1[%c1, %c0_16] : memref<2x32xf32, #tpu.memory_space<vmem>>, vector<1x32xf32>
    %c0_17 = arith.constant 0 : index
    %c0_18 = arith.constant 0 : index
    %20 = vector.load %arg2[%c0_17, %c0_18] : memref<2x32xf32, #tpu.memory_space<vmem>>, vector<1x32xf32>
    %c1_19 = arith.constant 1 : index
    %c0_20 = arith.constant 0 : index
    %21 = vector.load %arg2[%c1_19, %c0_20] : memref<2x32xf32, #tpu.memory_space<vmem>>, vector<1x32xf32>
    %22 = vector.extract_strided_slice %7 {offsets = [0, 0], sizes = [1, 128], strides = [1, 1]} : vector<8x128xf32> to vector<1x128xf32>
    %23 = arith.truncf %18 : vector<1x32xf32> to vector<1x32xbf16>
    %cst_21 = arith.constant dense<0.000000e+00> : vector<1x128xf32>
    %24 = tpu.matmul %23, %9, %cst_21 {dimension_numbers = #tpu.dot_dimension_numbers<[1], [0], [0], [1], [0, 0, 1, 1], [], []>} : vector<1x32xbf16>, vector<32x128xbf16>, vector<1x128xf32> -> vector<1x128xf32>
    %25 = arith.addf %22, %24 : vector<1x128xf32>
    %26 = arith.mulf %25, %16 : vector<1x128xf32>
    %27 = math.tanh %26 : vector<1x128xf32>
    %28 = arith.mulf %16, %27 : vector<1x128xf32>
    %29 = arith.addf %28, %17 : vector<1x128xf32>
    %30 = vector.extract_strided_slice %29 {offsets = [0, 0], sizes = [1, 32], strides = [1, 1]} : vector<1x128xf32> to vector<1x32xf32>
    %31 = vector.extract_strided_slice %29 {offsets = [0, 32], sizes = [1, 32], strides = [1, 1]} : vector<1x128xf32> to vector<1x32xf32>
    %32 = vector.extract_strided_slice %29 {offsets = [0, 64], sizes = [1, 32], strides = [1, 1]} : vector<1x128xf32> to vector<1x32xf32>
    %33 = vector.extract_strided_slice %29 {offsets = [0, 96], sizes = [1, 32], strides = [1, 1]} : vector<1x128xf32> to vector<1x32xf32>
    %34 = arith.mulf %31, %20 : vector<1x32xf32>
    %35 = arith.mulf %30, %32 : vector<1x32xf32>
    %36 = arith.addf %34, %35 : vector<1x32xf32>
    %37 = math.tanh %36 : vector<1x32xf32>
    %38 = arith.mulf %33, %37 : vector<1x32xf32>
    %39 = vector.extract_strided_slice %7 {offsets = [1, 0], sizes = [1, 128], strides = [1, 1]} : vector<8x128xf32> to vector<1x128xf32>
    %40 = arith.truncf %38 : vector<1x32xf32> to vector<1x32xbf16>
    %cst_22 = arith.constant dense<0.000000e+00> : vector<1x128xf32>
    %41 = tpu.matmul %40, %9, %cst_22 {dimension_numbers = #tpu.dot_dimension_numbers<[1], [0], [0], [1], [0, 0, 1, 1], [], []>} : vector<1x32xbf16>, vector<32x128xbf16>, vector<1x128xf32> -> vector<1x128xf32>
    %42 = arith.addf %39, %41 : vector<1x128xf32>
    %43 = arith.mulf %42, %16 : vector<1x128xf32>
    %44 = math.tanh %43 : vector<1x128xf32>
    %45 = arith.mulf %16, %44 : vector<1x128xf32>
    %46 = arith.addf %45, %17 : vector<1x128xf32>
    %47 = vector.extract_strided_slice %46 {offsets = [0, 0], sizes = [1, 32], strides = [1, 1]} : vector<1x128xf32> to vector<1x32xf32>
    %48 = vector.extract_strided_slice %46 {offsets = [0, 32], sizes = [1, 32], strides = [1, 1]} : vector<1x128xf32> to vector<1x32xf32>
    %49 = vector.extract_strided_slice %46 {offsets = [0, 64], sizes = [1, 32], strides = [1, 1]} : vector<1x128xf32> to vector<1x32xf32>
    %50 = vector.extract_strided_slice %46 {offsets = [0, 96], sizes = [1, 32], strides = [1, 1]} : vector<1x128xf32> to vector<1x32xf32>
    %51 = arith.mulf %48, %36 : vector<1x32xf32>
    %52 = arith.mulf %47, %49 : vector<1x32xf32>
    %53 = arith.addf %51, %52 : vector<1x32xf32>
    %54 = math.tanh %53 : vector<1x32xf32>
    %55 = arith.mulf %50, %54 : vector<1x32xf32>
    %56 = tpu.concatenate %38, %19 in 1 : vector<1x32xf32>, vector<1x32xf32> -> vector<1x64xf32>
    %57 = arith.truncf %56 : vector<1x64xf32> to vector<1x64xbf16>
    %cst_23 = arith.constant dense<0.000000e+00> : vector<1x128xf32>
    %58 = tpu.matmul %57, %11, %cst_23 {dimension_numbers = #tpu.dot_dimension_numbers<[1], [0], [0], [1], [0, 0, 1, 1], [], []>} : vector<1x64xbf16>, vector<64x128xbf16>, vector<1x128xf32> -> vector<1x128xf32>
    %59 = arith.addf %58, %12 : vector<1x128xf32>
    %60 = arith.mulf %59, %16 : vector<1x128xf32>
    %61 = math.tanh %60 : vector<1x128xf32>
    %62 = arith.mulf %16, %61 : vector<1x128xf32>
    %63 = arith.addf %62, %17 : vector<1x128xf32>
    %64 = vector.extract_strided_slice %63 {offsets = [0, 0], sizes = [1, 32], strides = [1, 1]} : vector<1x128xf32> to vector<1x32xf32>
    %65 = vector.extract_strided_slice %63 {offsets = [0, 32], sizes = [1, 32], strides = [1, 1]} : vector<1x128xf32> to vector<1x32xf32>
    %66 = vector.extract_strided_slice %63 {offsets = [0, 64], sizes = [1, 32], strides = [1, 1]} : vector<1x128xf32> to vector<1x32xf32>
    %67 = vector.extract_strided_slice %63 {offsets = [0, 96], sizes = [1, 32], strides = [1, 1]} : vector<1x128xf32> to vector<1x32xf32>
    %68 = arith.mulf %65, %21 : vector<1x32xf32>
    %69 = arith.mulf %64, %66 : vector<1x32xf32>
    %70 = arith.addf %68, %69 : vector<1x32xf32>
    %71 = math.tanh %70 : vector<1x32xf32>
    %72 = arith.mulf %67, %71 : vector<1x32xf32>
    %73 = vector.extract_strided_slice %7 {offsets = [2, 0], sizes = [1, 128], strides = [1, 1]} : vector<8x128xf32> to vector<1x128xf32>
    %74 = arith.truncf %55 : vector<1x32xf32> to vector<1x32xbf16>
    %cst_24 = arith.constant dense<0.000000e+00> : vector<1x128xf32>
    %75 = tpu.matmul %74, %9, %cst_24 {dimension_numbers = #tpu.dot_dimension_numbers<[1], [0], [0], [1], [0, 0, 1, 1], [], []>} : vector<1x32xbf16>, vector<32x128xbf16>, vector<1x128xf32> -> vector<1x128xf32>
    %76 = arith.addf %73, %75 : vector<1x128xf32>
    %77 = arith.mulf %76, %16 : vector<1x128xf32>
    %78 = math.tanh %77 : vector<1x128xf32>
    %79 = arith.mulf %16, %78 : vector<1x128xf32>
    %80 = arith.addf %79, %17 : vector<1x128xf32>
    %81 = vector.extract_strided_slice %80 {offsets = [0, 0], sizes = [1, 32], strides = [1, 1]} : vector<1x128xf32> to vector<1x32xf32>
    %82 = vector.extract_strided_slice %80 {offsets = [0, 32], sizes = [1, 32], strides = [1, 1]} : vector<1x128xf32> to vector<1x32xf32>
    %83 = vector.extract_strided_slice %80 {offsets = [0, 64], sizes = [1, 32], strides = [1, 1]} : vector<1x128xf32> to vector<1x32xf32>
    %84 = vector.extract_strided_slice %80 {offsets = [0, 96], sizes = [1, 32], strides = [1, 1]} : vector<1x128xf32> to vector<1x32xf32>
    %85 = arith.mulf %82, %53 : vector<1x32xf32>
    %86 = arith.mulf %81, %83 : vector<1x32xf32>
    %87 = arith.addf %85, %86 : vector<1x32xf32>
    %88 = math.tanh %87 : vector<1x32xf32>
    %89 = arith.mulf %84, %88 : vector<1x32xf32>
    %90 = tpu.concatenate %55, %72 in 1 : vector<1x32xf32>, vector<1x32xf32> -> vector<1x64xf32>
    %91 = arith.truncf %90 : vector<1x64xf32> to vector<1x64xbf16>
    %cst_25 = arith.constant dense<0.000000e+00> : vector<1x128xf32>
    %92 = tpu.matmul %91, %11, %cst_25 {dimension_numbers = #tpu.dot_dimension_numbers<[1], [0], [0], [1], [0, 0, 1, 1], [], []>} : vector<1x64xbf16>, vector<64x128xbf16>, vector<1x128xf32> -> vector<1x128xf32>
    %93 = arith.addf %92, %12 : vector<1x128xf32>
    %94 = arith.mulf %93, %16 : vector<1x128xf32>
    %95 = math.tanh %94 : vector<1x128xf32>
    %96 = arith.mulf %16, %95 : vector<1x128xf32>
    %97 = arith.addf %96, %17 : vector<1x128xf32>
    %98 = vector.extract_strided_slice %97 {offsets = [0, 0], sizes = [1, 32], strides = [1, 1]} : vector<1x128xf32> to vector<1x32xf32>
    %99 = vector.extract_strided_slice %97 {offsets = [0, 32], sizes = [1, 32], strides = [1, 1]} : vector<1x128xf32> to vector<1x32xf32>
    %100 = vector.extract_strided_slice %97 {offsets = [0, 64], sizes = [1, 32], strides = [1, 1]} : vector<1x128xf32> to vector<1x32xf32>
    %101 = vector.extract_strided_slice %97 {offsets = [0, 96], sizes = [1, 32], strides = [1, 1]} : vector<1x128xf32> to vector<1x32xf32>
    %102 = arith.mulf %99, %70 : vector<1x32xf32>
    %103 = arith.mulf %98, %100 : vector<1x32xf32>
    %104 = arith.addf %102, %103 : vector<1x32xf32>
    %105 = math.tanh %104 : vector<1x32xf32>
    %106 = arith.mulf %101, %105 : vector<1x32xf32>
    %107 = vector.extract_strided_slice %7 {offsets = [3, 0], sizes = [1, 128], strides = [1, 1]} : vector<8x128xf32> to vector<1x128xf32>
    %108 = arith.truncf %89 : vector<1x32xf32> to vector<1x32xbf16>
    %cst_26 = arith.constant dense<0.000000e+00> : vector<1x128xf32>
    %109 = tpu.matmul %108, %9, %cst_26 {dimension_numbers = #tpu.dot_dimension_numbers<[1], [0], [0], [1], [0, 0, 1, 1], [], []>} : vector<1x32xbf16>, vector<32x128xbf16>, vector<1x128xf32> -> vector<1x128xf32>
    %110 = arith.addf %107, %109 : vector<1x128xf32>
    %111 = arith.mulf %110, %16 : vector<1x128xf32>
    %112 = math.tanh %111 : vector<1x128xf32>
    %113 = arith.mulf %16, %112 : vector<1x128xf32>
    %114 = arith.addf %113, %17 : vector<1x128xf32>
    %115 = vector.extract_strided_slice %114 {offsets = [0, 0], sizes = [1, 32], strides = [1, 1]} : vector<1x128xf32> to vector<1x32xf32>
    %116 = vector.extract_strided_slice %114 {offsets = [0, 32], sizes = [1, 32], strides = [1, 1]} : vector<1x128xf32> to vector<1x32xf32>
    %117 = vector.extract_strided_slice %114 {offsets = [0, 64], sizes = [1, 32], strides = [1, 1]} : vector<1x128xf32> to vector<1x32xf32>
    %118 = vector.extract_strided_slice %114 {offsets = [0, 96], sizes = [1, 32], strides = [1, 1]} : vector<1x128xf32> to vector<1x32xf32>
    %119 = arith.mulf %116, %87 : vector<1x32xf32>
    %120 = arith.mulf %115, %117 : vector<1x32xf32>
    %121 = arith.addf %119, %120 : vector<1x32xf32>
    %122 = math.tanh %121 : vector<1x32xf32>
    %123 = arith.mulf %118, %122 : vector<1x32xf32>
    %124 = tpu.concatenate %89, %106 in 1 : vector<1x32xf32>, vector<1x32xf32> -> vector<1x64xf32>
    %125 = arith.truncf %124 : vector<1x64xf32> to vector<1x64xbf16>
    %cst_27 = arith.constant dense<0.000000e+00> : vector<1x128xf32>
    %126 = tpu.matmul %125, %11, %cst_27 {dimension_numbers = #tpu.dot_dimension_numbers<[1], [0], [0], [1], [0, 0, 1, 1], [], []>} : vector<1x64xbf16>, vector<64x128xbf16>, vector<1x128xf32> -> vector<1x128xf32>
    %127 = arith.addf %126, %12 : vector<1x128xf32>
    %128 = arith.mulf %127, %16 : vector<1x128xf32>
    %129 = math.tanh %128 : vector<1x128xf32>
    %130 = arith.mulf %16, %129 : vector<1x128xf32>
    %131 = arith.addf %130, %17 : vector<1x128xf32>
    %132 = vector.extract_strided_slice %131 {offsets = [0, 0], sizes = [1, 32], strides = [1, 1]} : vector<1x128xf32> to vector<1x32xf32>
    %133 = vector.extract_strided_slice %131 {offsets = [0, 32], sizes = [1, 32], strides = [1, 1]} : vector<1x128xf32> to vector<1x32xf32>
    %134 = vector.extract_strided_slice %131 {offsets = [0, 64], sizes = [1, 32], strides = [1, 1]} : vector<1x128xf32> to vector<1x32xf32>
    %135 = vector.extract_strided_slice %131 {offsets = [0, 96], sizes = [1, 32], strides = [1, 1]} : vector<1x128xf32> to vector<1x32xf32>
    %136 = arith.mulf %133, %104 : vector<1x32xf32>
    %137 = arith.mulf %132, %134 : vector<1x32xf32>
    %138 = arith.addf %136, %137 : vector<1x32xf32>
    %139 = math.tanh %138 : vector<1x32xf32>
    %140 = arith.mulf %135, %139 : vector<1x32xf32>
    %141 = vector.extract_strided_slice %7 {offsets = [4, 0], sizes = [1, 128], strides = [1, 1]} : vector<8x128xf32> to vector<1x128xf32>
    %142 = arith.truncf %123 : vector<1x32xf32> to vector<1x32xbf16>
    %cst_28 = arith.constant dense<0.000000e+00> : vector<1x128xf32>
    %143 = tpu.matmul %142, %9, %cst_28 {dimension_numbers = #tpu.dot_dimension_numbers<[1], [0], [0], [1], [0, 0, 1, 1], [], []>} : vector<1x32xbf16>, vector<32x128xbf16>, vector<1x128xf32> -> vector<1x128xf32>
    %144 = arith.addf %141, %143 : vector<1x128xf32>
    %145 = arith.mulf %144, %16 : vector<1x128xf32>
    %146 = math.tanh %145 : vector<1x128xf32>
    %147 = arith.mulf %16, %146 : vector<1x128xf32>
    %148 = arith.addf %147, %17 : vector<1x128xf32>
    %149 = vector.extract_strided_slice %148 {offsets = [0, 0], sizes = [1, 32], strides = [1, 1]} : vector<1x128xf32> to vector<1x32xf32>
    %150 = vector.extract_strided_slice %148 {offsets = [0, 32], sizes = [1, 32], strides = [1, 1]} : vector<1x128xf32> to vector<1x32xf32>
    %151 = vector.extract_strided_slice %148 {offsets = [0, 64], sizes = [1, 32], strides = [1, 1]} : vector<1x128xf32> to vector<1x32xf32>
    %152 = vector.extract_strided_slice %148 {offsets = [0, 96], sizes = [1, 32], strides = [1, 1]} : vector<1x128xf32> to vector<1x32xf32>
    %153 = arith.mulf %150, %121 : vector<1x32xf32>
    %154 = arith.mulf %149, %151 : vector<1x32xf32>
    %155 = arith.addf %153, %154 : vector<1x32xf32>
    %156 = math.tanh %155 : vector<1x32xf32>
    %157 = arith.mulf %152, %156 : vector<1x32xf32>
    %158 = tpu.concatenate %123, %140 in 1 : vector<1x32xf32>, vector<1x32xf32> -> vector<1x64xf32>
    %159 = arith.truncf %158 : vector<1x64xf32> to vector<1x64xbf16>
    %cst_29 = arith.constant dense<0.000000e+00> : vector<1x128xf32>
    %160 = tpu.matmul %159, %11, %cst_29 {dimension_numbers = #tpu.dot_dimension_numbers<[1], [0], [0], [1], [0, 0, 1, 1], [], []>} : vector<1x64xbf16>, vector<64x128xbf16>, vector<1x128xf32> -> vector<1x128xf32>
    %161 = arith.addf %160, %12 : vector<1x128xf32>
    %162 = arith.mulf %161, %16 : vector<1x128xf32>
    %163 = math.tanh %162 : vector<1x128xf32>
    %164 = arith.mulf %16, %163 : vector<1x128xf32>
    %165 = arith.addf %164, %17 : vector<1x128xf32>
    %166 = vector.extract_strided_slice %165 {offsets = [0, 0], sizes = [1, 32], strides = [1, 1]} : vector<1x128xf32> to vector<1x32xf32>
    %167 = vector.extract_strided_slice %165 {offsets = [0, 32], sizes = [1, 32], strides = [1, 1]} : vector<1x128xf32> to vector<1x32xf32>
    %168 = vector.extract_strided_slice %165 {offsets = [0, 64], sizes = [1, 32], strides = [1, 1]} : vector<1x128xf32> to vector<1x32xf32>
    %169 = vector.extract_strided_slice %165 {offsets = [0, 96], sizes = [1, 32], strides = [1, 1]} : vector<1x128xf32> to vector<1x32xf32>
    %170 = arith.mulf %167, %138 : vector<1x32xf32>
    %171 = arith.mulf %166, %168 : vector<1x32xf32>
    %172 = arith.addf %170, %171 : vector<1x32xf32>
    %173 = math.tanh %172 : vector<1x32xf32>
    %174 = arith.mulf %169, %173 : vector<1x32xf32>
    %175 = vector.extract_strided_slice %7 {offsets = [5, 0], sizes = [1, 128], strides = [1, 1]} : vector<8x128xf32> to vector<1x128xf32>
    %176 = arith.truncf %157 : vector<1x32xf32> to vector<1x32xbf16>
    %cst_30 = arith.constant dense<0.000000e+00> : vector<1x128xf32>
    %177 = tpu.matmul %176, %9, %cst_30 {dimension_numbers = #tpu.dot_dimension_numbers<[1], [0], [0], [1], [0, 0, 1, 1], [], []>} : vector<1x32xbf16>, vector<32x128xbf16>, vector<1x128xf32> -> vector<1x128xf32>
    %178 = arith.addf %175, %177 : vector<1x128xf32>
    %179 = arith.mulf %178, %16 : vector<1x128xf32>
    %180 = math.tanh %179 : vector<1x128xf32>
    %181 = arith.mulf %16, %180 : vector<1x128xf32>
    %182 = arith.addf %181, %17 : vector<1x128xf32>
    %183 = vector.extract_strided_slice %182 {offsets = [0, 0], sizes = [1, 32], strides = [1, 1]} : vector<1x128xf32> to vector<1x32xf32>
    %184 = vector.extract_strided_slice %182 {offsets = [0, 32], sizes = [1, 32], strides = [1, 1]} : vector<1x128xf32> to vector<1x32xf32>
    %185 = vector.extract_strided_slice %182 {offsets = [0, 64], sizes = [1, 32], strides = [1, 1]} : vector<1x128xf32> to vector<1x32xf32>
    %186 = vector.extract_strided_slice %182 {offsets = [0, 96], sizes = [1, 32], strides = [1, 1]} : vector<1x128xf32> to vector<1x32xf32>
    %187 = arith.mulf %184, %155 : vector<1x32xf32>
    %188 = arith.mulf %183, %185 : vector<1x32xf32>
    %189 = arith.addf %187, %188 : vector<1x32xf32>
    %190 = math.tanh %189 : vector<1x32xf32>
    %191 = arith.mulf %186, %190 : vector<1x32xf32>
    %192 = tpu.concatenate %157, %174 in 1 : vector<1x32xf32>, vector<1x32xf32> -> vector<1x64xf32>
    %193 = arith.truncf %192 : vector<1x64xf32> to vector<1x64xbf16>
    %cst_31 = arith.constant dense<0.000000e+00> : vector<1x128xf32>
    %194 = tpu.matmul %193, %11, %cst_31 {dimension_numbers = #tpu.dot_dimension_numbers<[1], [0], [0], [1], [0, 0, 1, 1], [], []>} : vector<1x64xbf16>, vector<64x128xbf16>, vector<1x128xf32> -> vector<1x128xf32>
    %195 = arith.addf %194, %12 : vector<1x128xf32>
    %196 = arith.mulf %195, %16 : vector<1x128xf32>
    %197 = math.tanh %196 : vector<1x128xf32>
    %198 = arith.mulf %16, %197 : vector<1x128xf32>
    %199 = arith.addf %198, %17 : vector<1x128xf32>
    %200 = vector.extract_strided_slice %199 {offsets = [0, 0], sizes = [1, 32], strides = [1, 1]} : vector<1x128xf32> to vector<1x32xf32>
    %201 = vector.extract_strided_slice %199 {offsets = [0, 32], sizes = [1, 32], strides = [1, 1]} : vector<1x128xf32> to vector<1x32xf32>
    %202 = vector.extract_strided_slice %199 {offsets = [0, 64], sizes = [1, 32], strides = [1, 1]} : vector<1x128xf32> to vector<1x32xf32>
    %203 = vector.extract_strided_slice %199 {offsets = [0, 96], sizes = [1, 32], strides = [1, 1]} : vector<1x128xf32> to vector<1x32xf32>
    %204 = arith.mulf %201, %172 : vector<1x32xf32>
    %205 = arith.mulf %200, %202 : vector<1x32xf32>
    %206 = arith.addf %204, %205 : vector<1x32xf32>
    %207 = math.tanh %206 : vector<1x32xf32>
    %208 = arith.mulf %203, %207 : vector<1x32xf32>
    %209 = vector.extract_strided_slice %7 {offsets = [6, 0], sizes = [1, 128], strides = [1, 1]} : vector<8x128xf32> to vector<1x128xf32>
    %210 = arith.truncf %191 : vector<1x32xf32> to vector<1x32xbf16>
    %cst_32 = arith.constant dense<0.000000e+00> : vector<1x128xf32>
    %211 = tpu.matmul %210, %9, %cst_32 {dimension_numbers = #tpu.dot_dimension_numbers<[1], [0], [0], [1], [0, 0, 1, 1], [], []>} : vector<1x32xbf16>, vector<32x128xbf16>, vector<1x128xf32> -> vector<1x128xf32>
    %212 = arith.addf %209, %211 : vector<1x128xf32>
    %213 = arith.mulf %212, %16 : vector<1x128xf32>
    %214 = math.tanh %213 : vector<1x128xf32>
    %215 = arith.mulf %16, %214 : vector<1x128xf32>
    %216 = arith.addf %215, %17 : vector<1x128xf32>
    %217 = vector.extract_strided_slice %216 {offsets = [0, 0], sizes = [1, 32], strides = [1, 1]} : vector<1x128xf32> to vector<1x32xf32>
    %218 = vector.extract_strided_slice %216 {offsets = [0, 32], sizes = [1, 32], strides = [1, 1]} : vector<1x128xf32> to vector<1x32xf32>
    %219 = vector.extract_strided_slice %216 {offsets = [0, 64], sizes = [1, 32], strides = [1, 1]} : vector<1x128xf32> to vector<1x32xf32>
    %220 = vector.extract_strided_slice %216 {offsets = [0, 96], sizes = [1, 32], strides = [1, 1]} : vector<1x128xf32> to vector<1x32xf32>
    %221 = arith.mulf %218, %189 : vector<1x32xf32>
    %222 = arith.mulf %217, %219 : vector<1x32xf32>
    %223 = arith.addf %221, %222 : vector<1x32xf32>
    %224 = math.tanh %223 : vector<1x32xf32>
    %225 = arith.mulf %220, %224 : vector<1x32xf32>
    %226 = tpu.concatenate %191, %208 in 1 : vector<1x32xf32>, vector<1x32xf32> -> vector<1x64xf32>
    %227 = arith.truncf %226 : vector<1x64xf32> to vector<1x64xbf16>
    %cst_33 = arith.constant dense<0.000000e+00> : vector<1x128xf32>
    %228 = tpu.matmul %227, %11, %cst_33 {dimension_numbers = #tpu.dot_dimension_numbers<[1], [0], [0], [1], [0, 0, 1, 1], [], []>} : vector<1x64xbf16>, vector<64x128xbf16>, vector<1x128xf32> -> vector<1x128xf32>
    %229 = arith.addf %228, %12 : vector<1x128xf32>
    %230 = arith.mulf %229, %16 : vector<1x128xf32>
    %231 = math.tanh %230 : vector<1x128xf32>
    %232 = arith.mulf %16, %231 : vector<1x128xf32>
    %233 = arith.addf %232, %17 : vector<1x128xf32>
    %234 = vector.extract_strided_slice %233 {offsets = [0, 0], sizes = [1, 32], strides = [1, 1]} : vector<1x128xf32> to vector<1x32xf32>
    %235 = vector.extract_strided_slice %233 {offsets = [0, 32], sizes = [1, 32], strides = [1, 1]} : vector<1x128xf32> to vector<1x32xf32>
    %236 = vector.extract_strided_slice %233 {offsets = [0, 64], sizes = [1, 32], strides = [1, 1]} : vector<1x128xf32> to vector<1x32xf32>
    %237 = vector.extract_strided_slice %233 {offsets = [0, 96], sizes = [1, 32], strides = [1, 1]} : vector<1x128xf32> to vector<1x32xf32>
    %238 = arith.mulf %235, %206 : vector<1x32xf32>
    %239 = arith.mulf %234, %236 : vector<1x32xf32>
    %240 = arith.addf %238, %239 : vector<1x32xf32>
    %241 = math.tanh %240 : vector<1x32xf32>
    %242 = arith.mulf %237, %241 : vector<1x32xf32>
    %243 = vector.extract_strided_slice %7 {offsets = [7, 0], sizes = [1, 128], strides = [1, 1]} : vector<8x128xf32> to vector<1x128xf32>
    %244 = arith.truncf %225 : vector<1x32xf32> to vector<1x32xbf16>
    %cst_34 = arith.constant dense<0.000000e+00> : vector<1x128xf32>
    %245 = tpu.matmul %244, %9, %cst_34 {dimension_numbers = #tpu.dot_dimension_numbers<[1], [0], [0], [1], [0, 0, 1, 1], [], []>} : vector<1x32xbf16>, vector<32x128xbf16>, vector<1x128xf32> -> vector<1x128xf32>
    %246 = arith.addf %243, %245 : vector<1x128xf32>
    %247 = arith.mulf %246, %16 : vector<1x128xf32>
    %248 = math.tanh %247 : vector<1x128xf32>
    %249 = arith.mulf %16, %248 : vector<1x128xf32>
    %250 = arith.addf %249, %17 : vector<1x128xf32>
    %251 = vector.extract_strided_slice %250 {offsets = [0, 0], sizes = [1, 32], strides = [1, 1]} : vector<1x128xf32> to vector<1x32xf32>
    %252 = vector.extract_strided_slice %250 {offsets = [0, 32], sizes = [1, 32], strides = [1, 1]} : vector<1x128xf32> to vector<1x32xf32>
    %253 = vector.extract_strided_slice %250 {offsets = [0, 64], sizes = [1, 32], strides = [1, 1]} : vector<1x128xf32> to vector<1x32xf32>
    %254 = vector.extract_strided_slice %250 {offsets = [0, 96], sizes = [1, 32], strides = [1, 1]} : vector<1x128xf32> to vector<1x32xf32>
    %255 = arith.mulf %252, %223 : vector<1x32xf32>
    %256 = arith.mulf %251, %253 : vector<1x32xf32>
    %257 = arith.addf %255, %256 : vector<1x32xf32>
    %258 = math.tanh %257 : vector<1x32xf32>
    %259 = arith.mulf %254, %258 : vector<1x32xf32>
    %260 = tpu.concatenate %225, %242 in 1 : vector<1x32xf32>, vector<1x32xf32> -> vector<1x64xf32>
    %261 = arith.truncf %260 : vector<1x64xf32> to vector<1x64xbf16>
    %cst_35 = arith.constant dense<0.000000e+00> : vector<1x128xf32>
    %262 = tpu.matmul %261, %11, %cst_35 {dimension_numbers = #tpu.dot_dimension_numbers<[1], [0], [0], [1], [0, 0, 1, 1], [], []>} : vector<1x64xbf16>, vector<64x128xbf16>, vector<1x128xf32> -> vector<1x128xf32>
    %263 = arith.addf %262, %12 : vector<1x128xf32>
    %264 = arith.mulf %263, %16 : vector<1x128xf32>
    %265 = math.tanh %264 : vector<1x128xf32>
    %266 = arith.mulf %16, %265 : vector<1x128xf32>
    %267 = arith.addf %266, %17 : vector<1x128xf32>
    %268 = vector.extract_strided_slice %267 {offsets = [0, 0], sizes = [1, 32], strides = [1, 1]} : vector<1x128xf32> to vector<1x32xf32>
    %269 = vector.extract_strided_slice %267 {offsets = [0, 32], sizes = [1, 32], strides = [1, 1]} : vector<1x128xf32> to vector<1x32xf32>
    %270 = vector.extract_strided_slice %267 {offsets = [0, 64], sizes = [1, 32], strides = [1, 1]} : vector<1x128xf32> to vector<1x32xf32>
    %271 = vector.extract_strided_slice %267 {offsets = [0, 96], sizes = [1, 32], strides = [1, 1]} : vector<1x128xf32> to vector<1x32xf32>
    %272 = arith.mulf %269, %240 : vector<1x32xf32>
    %273 = arith.mulf %268, %270 : vector<1x32xf32>
    %274 = arith.addf %272, %273 : vector<1x32xf32>
    %275 = math.tanh %274 : vector<1x32xf32>
    %276 = arith.mulf %271, %275 : vector<1x32xf32>
    %277 = tpu.concatenate %259, %276 in 1 : vector<1x32xf32>, vector<1x32xf32> -> vector<1x64xf32>
    %278 = arith.truncf %277 : vector<1x64xf32> to vector<1x64xbf16>
    %cst_36 = arith.constant dense<0.000000e+00> : vector<1x128xf32>
    %279 = tpu.matmul %278, %11, %cst_36 {dimension_numbers = #tpu.dot_dimension_numbers<[1], [0], [0], [1], [0, 0, 1, 1], [], []>} : vector<1x64xbf16>, vector<64x128xbf16>, vector<1x128xf32> -> vector<1x128xf32>
    %280 = arith.addf %279, %12 : vector<1x128xf32>
    %281 = arith.mulf %280, %16 : vector<1x128xf32>
    %282 = math.tanh %281 : vector<1x128xf32>
    %283 = arith.mulf %16, %282 : vector<1x128xf32>
    %284 = arith.addf %283, %17 : vector<1x128xf32>
    %285 = vector.extract_strided_slice %284 {offsets = [0, 0], sizes = [1, 32], strides = [1, 1]} : vector<1x128xf32> to vector<1x32xf32>
    %286 = vector.extract_strided_slice %284 {offsets = [0, 32], sizes = [1, 32], strides = [1, 1]} : vector<1x128xf32> to vector<1x32xf32>
    %287 = vector.extract_strided_slice %284 {offsets = [0, 64], sizes = [1, 32], strides = [1, 1]} : vector<1x128xf32> to vector<1x32xf32>
    %288 = vector.extract_strided_slice %284 {offsets = [0, 96], sizes = [1, 32], strides = [1, 1]} : vector<1x128xf32> to vector<1x32xf32>
    %289 = arith.mulf %286, %274 : vector<1x32xf32>
    %290 = arith.mulf %285, %287 : vector<1x32xf32>
    %291 = arith.addf %289, %290 : vector<1x32xf32>
    %292 = math.tanh %291 : vector<1x32xf32>
    %293 = arith.mulf %288, %292 : vector<1x32xf32>
    %294 = tpu.concatenate %72, %106, %140, %174, %208, %242, %276, %293 in 0 : vector<1x32xf32>, vector<1x32xf32>, vector<1x32xf32>, vector<1x32xf32>, vector<1x32xf32>, vector<1x32xf32>, vector<1x32xf32>, vector<1x32xf32> -> vector<8x32xf32>
    %c0_37 = arith.constant 0 : index
    %c0_38 = arith.constant 0 : index
    %295 = vector.load %arg8[%c0_37, %c0_38] : memref<8x32xf32, #tpu.memory_space<vmem>>, vector<8x32xf32>
    tpu.vector_store %arg8[%c0_37, %c0_38], %294 {strides = array<i32>} : memref<8x32xf32, #tpu.memory_space<vmem>>, vector<8x32xf32>,
    return
  }
}

</mosaic_0001>

<llo_original>
// kernel: tpu_custom_call.1
$region0: #{tpu_custom_call.1}
  #allocation0 [shape = 'u32[]', space=smem, size = 0x4, offset = 0x4, fixed_abs, tag = 'smem constant byte address 0x4 - core index']
  #allocation1 [shape = 'u32[144,128]{1,0:T(1,128)}', space=vmem, size = 0x12000, scoped, tag = 'internal scratch']
  %s0 = inlined_call_operand.hbm [shape: f32[8,16], index: 0, kind: input, shape index: {}]
  %s1 = inlined_call_operand.vmem [shape: f32[2,32], index: 1, kind: input, shape index: {}]
  %s2 = inlined_call_operand.vmem [shape: f32[2,32], index: 2, kind: input, shape index: {}]
  %s3 = inlined_call_operand.hbm [shape: f32[16,128], index: 3, kind: input, shape index: {}]
  %s4 = inlined_call_operand.hbm [shape: f32[32,128], index: 4, kind: input, shape index: {}]
  %s5 = inlined_call_operand.vmem [shape: f32[1,128], index: 5, kind: input, shape index: {}]
  %s6 = inlined_call_operand.hbm [shape: f32[64,128], index: 6, kind: input, shape index: {}]
  %s7 = inlined_call_operand.vmem [shape: f32[1,128], index: 7, kind: input, shape index: {}]
  %s8 = inlined_call_operand.hbm [shape: f32[8,32], index: 8, kind: output, shape index: {}]
  %s9 = sld [smem:[#allocation0]]
  $region58: #{tpu_custom_call.1} parent=0
    _
  %s11 = ssub.s32 1, %s9
  %s12 = scalar_select 0, %s11, %s9
  $region1: #{tpu_custom_call.1} parent=0
    #allocation2 [shape = 'u8[4096]{0}', space=vmem, size = 0x1000, scoped, tag = 'input window, operand 0, single buffered']
    #allocation3 [shape = 's32[1]{0}', space=sflag, size = 0x4, scoped, tag = 'scoped memory for tpu_custom_call.1']
    #allocation4 [shape = 's32[1]{0}', space=sflag, size = 0x4, scoped, tag = 'scoped memory for tpu_custom_call.1']
    #allocation5 [shape = 'u8[8192]{0}', space=vmem, size = 0x2000, scoped, tag = 'input window, operand 3, single buffered']
    #allocation6 [shape = 's32[1]{0}', space=sflag, size = 0x4, scoped, tag = 'scoped memory for tpu_custom_call.1']
    #allocation7 [shape = 'u8[16384]{0}', space=vmem, size = 0x4000, scoped, tag = 'input window, operand 4, single buffered']
    #allocation8 [shape = 'u8[32768]{0}', space=vmem, size = 0x8000, scoped, tag = 'input window, operand 6, single buffered']
    #allocation9 [shape = 's32[1]{0}', space=sflag, size = 0x4, scoped, tag = 'scoped memory for tpu_custom_call.1']
    #allocation10 [shape = 'u8[4096]{0}', space=vmem, size = 0x1000, scoped, tag = 'output window, operand 0, single buffered']
    %13 = vsyncpa [#allocation3], 0
    %14 = vsyncpa [#allocation6], 0
    %15 = vsyncpa [#allocation9], 0
    %16 = vsyncpa [#allocation4], 0
    // Predicated region
    $region2: #{tpu_custom_call.1} parent=1 // pred_check
      _
    $region3: #{tpu_custom_call.1} parent=1 // pred_check_branch
      %18 = sbr.rel (0) target = $region5
    $region4: #{tpu_custom_call.1} parent=1 // pred_region
      %s20 = ssub.s32 128, 128
      %21 = vsyncadd [#allocation3], %s20
      %s23 = sshll.u32 [#allocation2], 4
      %s24 = int_to_ptr.vmem [resolvable:$true] %s23
      %26 = dma.hbm_to_vmem [thread:$0]  %s0, 128, %s24, [#allocation3]
    $region5: #{tpu_custom_call.1} parent=1 // pred_fallthru
      _
    // Predicated region
    $region6: #{tpu_custom_call.1} parent=1 // pred_check
      _
    $region7: #{tpu_custom_call.1} parent=1 // pred_check_branch
      %28 = sbr.rel (0) target = $region9
    $region8: #{tpu_custom_call.1} parent=1 // pred_region
      _
    $region9: #{tpu_custom_call.1} parent=1 // pred_fallthru
      _
    // Predicated region
    $region10: #{tpu_custom_call.1} parent=1 // pred_check
      _
    $region11: #{tpu_custom_call.1} parent=1 // pred_check_branch
      %30 = sbr.rel (0) target = $region13
    $region12: #{tpu_custom_call.1} parent=1 // pred_region
      _
    $region13: #{tpu_custom_call.1} parent=1 // pred_fallthru
      _
    // Predicated region
    $region14: #{tpu_custom_call.1} parent=1 // pred_check
      _
    $region15: #{tpu_custom_call.1} parent=1 // pred_check_branch
      %32 = sbr.rel (0) target = $region17
    $region16: #{tpu_custom_call.1} parent=1 // pred_region
      %s34 = ssub.s32 256, 256
      %35 = vsyncadd [#allocation6], %s34
      %s36 = sshll.u32 [#allocation5], 4
      %s37 = int_to_ptr.vmem [resolvable:$true] %s36
      %42 = dma.hbm_to_vmem [thread:$0]  %s3, 256, %s37, [#allocation6], 128, 128, 8
    $region17: #{tpu_custom_call.1} parent=1 // pred_fallthru
      _
    // Predicated region
    $region18: #{tpu_custom_call.1} parent=1 // pred_check
      _
    $region19: #{tpu_custom_call.1} parent=1 // pred_check_branch
      %44 = sbr.rel (0) target = $region21
    $region20: #{tpu_custom_call.1} parent=1 // pred_region
      %s46 = ssub.s32 512, 512
      %47 = vsyncadd [#allocation6], %s46
      %s48 = sshll.u32 [#allocation7], 4
      %s49 = int_to_ptr.vmem [resolvable:$true] %s48
      %54 = dma.hbm_to_vmem [thread:$0]  %s4, 512, %s49, [#allocation6], 128, 128, 8
    $region21: #{tpu_custom_call.1} parent=1 // pred_fallthru
      _
    // Predicated region
    $region22: #{tpu_custom_call.1} parent=1 // pred_check
      _
    $region23: #{tpu_custom_call.1} parent=1 // pred_check_branch
      %56 = sbr.rel (0) target = $region25
    $region24: #{tpu_custom_call.1} parent=1 // pred_region
      _
    $region25: #{tpu_custom_call.1} parent=1 // pred_fallthru
      _
    // Predicated region
    $region26: #{tpu_custom_call.1} parent=1 // pred_check
      _
    $region27: #{tpu_custom_call.1} parent=1 // pred_check_branch
      %58 = sbr.rel (0) target = $region29
    $region28: #{tpu_custom_call.1} parent=1 // pred_region
      %s60 = ssub.s32 1024, 1024
      %61 = vsyncadd [#allocation9], %s60
      %s62 = sshll.u32 [#allocation8], 4
      %s63 = int_to_ptr.vmem [resolvable:$true] %s62
      %68 = dma.hbm_to_vmem [thread:$0]  %s6, 1024, %s63, [#allocation9], 128, 128, 8
    $region29: #{tpu_custom_call.1} parent=1 // pred_fallthru
      _
    // Predicated region
    $region30: #{tpu_custom_call.1} parent=1 // pred_check
      _
    $region31: #{tpu_custom_call.1} parent=1 // pred_check_branch
      %70 = sbr.rel (0) target = $region33
    $region32: #{tpu_custom_call.1} parent=1 // pred_region
      _
    $region33: #{tpu_custom_call.1} parent=1 // pred_fallthru
      _
    // Predicated region
    $region34: #{tpu_custom_call.1} parent=1 // pred_check
      _
    $region35: #{tpu_custom_call.1} parent=1 // pred_check_branch
      %72 = sbr.rel (0) target = $region37
    $region36: #{tpu_custom_call.1} parent=1 // pred_region
      %73 = dma.done [#allocation3], 128
    $region37: #{tpu_custom_call.1} parent=1 // pred_fallthru
      _
    // Predicated region
    $region38: #{tpu_custom_call.1} parent=1 // pred_check
      _
    $region39: #{tpu_custom_call.1} parent=1 // pred_check_branch
      %75 = sbr.rel (0) target = $region41
    $region40: #{tpu_custom_call.1} parent=1 // pred_region
      %76 = dma.done [#allocation6], 256
    $region41: #{tpu_custom_call.1} parent=1 // pred_fallthru
      _
    // Predicated region
    $region42: #{tpu_custom_call.1} parent=1 // pred_check
      _
    $region43: #{tpu_custom_call.1} parent=1 // pred_check_branch
      %78 = sbr.rel (0) target = $region45
    $region44: #{tpu_custom_call.1} parent=1 // pred_region
      %79 = dma.done [#allocation6], 512
    $region45: #{tpu_custom_call.1} parent=1 // pred_fallthru
      _
    // Predicated region
    $region46: #{tpu_custom_call.1} parent=1 // pred_check
      _
    $region47: #{tpu_custom_call.1} parent=1 // pred_check_branch
      %81 = sbr.rel (0) target = $region49
    $region48: #{tpu_custom_call.1} parent=1 // pred_region
      %82 = dma.done [#allocation9], 1024
    $region49: #{tpu_custom_call.1} parent=1 // pred_fallthru
      _
    %v84 = vld [vmem:[#allocation2] sm:$0xff]
    %v85 = vpack.c.bf16 %v84, %v84
    %v86 = vld [vmem:[#allocation5] sm:$0xff]
    %v87 = vld [vmem:[#allocation5 + $0x8] sm:$0xff]
    %v88 = vpack.c.bf16 %v87, %v86
    %v89 = vld [vmem:[%s5] sm:$0x1]
    %v91 = vlaneseq
    %v92 = vshrl.u32 %v91, 7
    %v93 = vsub.s32 0, %v92
    %v94 = vrot.slane %v89, %v93
    %vm96 = vcmask 130048
    %v98 = vsel %vm96, %v85, 0
    %100 = vmatprep.subr.bf16.mxu0 0
    %101 = vmatpush1.bf16.msra.mxu0 %v88
    %102 = vmatprep.subr.bf16.mxu0 0
    %103 = vmatpush1.bf16.msra.mxu0 0
    %104 = vmatprep.subr.bf16.mxu0 0
    %105 = vmatpush1.bf16.msra.mxu0 0
    %106 = vmatprep.subr.bf16.mxu0 0
    %107 = vmatpush1.bf16.msra.mxu0 0
    %108 = vmatprep.subr.bf16.mxu0 0
    %109 = vmatpush1.bf16.msra.mxu0 0
    %110 = vmatprep.subr.bf16.mxu0 0
    %111 = vmatpush1.bf16.msra.mxu0 0
    %112 = vmatprep.subr.bf16.mxu0 0
    %113 = vmatpush1.bf16.msra.mxu0 0
    %114 = vmatprep.subr.bf16.mxu0 0
    %115 = vmatpush1.bf16.msra.mxu0 0
    %116 = vmatprep.subr.bf16.mxu0 0
    %117 = vmatpush1.bf16.msra.mxu0 0
    %118 = vmatprep.subr.bf16.mxu0 0
    %119 = vmatpush1.bf16.msra.mxu0 0
    %120 = vmatprep.subr.bf16.mxu0 0
    %121 = vmatpush1.bf16.msra.mxu0 0
    %122 = vmatprep.subr.bf16.mxu0 0
    %123 = vmatpush1.bf16.msra.mxu0 0
    %124 = vmatprep.subr.bf16.mxu0 0
    %125 = vmatpush1.bf16.msra.mxu0 0
    %126 = vmatprep.subr.bf16.mxu0 0
    %127 = vmatpush1.bf16.msra.mxu0 0
    %128 = vmatprep.subr.bf16.mxu0 0
    %129 = vmatpush1.bf16.msra.mxu0 0
    %130 = vmatprep.subr.bf16.mxu0 0
    %131 = vmatpush1.bf16.msra.mxu0 0
    %132 = vmatprep.mubr.bf16.mxu0 0
    %133 = vmatmul.mubr.bf16.gmra.mrb[0].mxu0 %v98
    %v134 = vpop.f32.mrb[0].mxu0
    %v135 = vadd.f32 %v94, %v134
    %v136 = vpop.f32.mrb[0].mxu0
    %v137 = vpop.f32.mrb[0].mxu0
    %v138 = vpop.f32.mrb[0].mxu0
    %139 = vdwg.mxu0
    %v140 = vld [vmem:[#allocation7] sm:$0xff]
    %v141 = vld [vmem:[#allocation7 + $0x8] sm:$0xff]
    %v142 = vld [vmem:[#allocation7 + $0x10] sm:$0xff]
    %v143 = vld [vmem:[#allocation7 + $0x18] sm:$0xff]
    %v144 = vpack.c.bf16 %v141, %v140
    %v145 = vpack.c.bf16 %v143, %v142
    %v146 = vld [vmem:[#allocation8] sm:$0xff]
    %v147 = vld [vmem:[#allocation8 + $0x8] sm:$0xff]
    %v148 = vld [vmem:[#allocation8 + $0x10] sm:$0xff]
    %v149 = vld [vmem:[#allocation8 + $0x18] sm:$0xff]
    %v150 = vld [vmem:[#allocation8 + $0x20] sm:$0xff]
    %v151 = vld [vmem:[#allocation8 + $0x28] sm:$0xff]
    %v152 = vld [vmem:[#allocation8 + $0x30] sm:$0xff]
    %v153 = vld [vmem:[#allocation8 + $0x38] sm:$0xff]
    %v154 = vpack.c.bf16 %v147, %v146
    %v155 = vpack.c.bf16 %v149, %v148
    %v156 = vpack.c.bf16 %v151, %v150
    %v157 = vpack.c.bf16 %v153, %v152
    %v158 = vld [vmem:[%s7] sm:$0x1]
    %vm159 = vcmask 523264
    %v160 = vsel %vm159, 0.5, 1.0
    %vm161 = vcmask 785408
    %v162 = vsel %vm161, %v160, 0.5
    %v163 = vsel %vm159, 0.5, 0.0
    %v164 = vsel %vm161, %v163, 0.5
    %v165 = vld [vmem:[%s1] sm:$0x1]
    %v166 = vld [vmem:[%s1 + $0x1] sm:$0x1]
    %v167 = vld [vmem:[%s2] sm:$0x1]
    %v168 = vld [vmem:[%s2 + $0x1] sm:$0x1]
    %v169 = vpack.c.bf16 %v165, %v165
    %vm170 = vcmask 261120
    %v172 = vsel %vm170, %v169, 0
    %174 = vmatprep.subr.bf16.mxu0 0
    %175 = vmatpush1.bf16.msra.mxu0 %v144
    %176 = vmatprep.subr.bf16.mxu0 0
    %177 = vmatpush1.bf16.msra.mxu0 %v145
    %178 = vmatprep.subr.bf16.mxu0 0
    %179 = vmatpush1.bf16.msra.mxu0 0
    %180 = vmatprep.subr.bf16.mxu0 0
    %181 = vmatpush1.bf16.msra.mxu0 0
    %182 = vmatprep.subr.bf16.mxu0 0
    %183 = vmatpush1.bf16.msra.mxu0 0
    %184 = vmatprep.subr.bf16.mxu0 0
    %185 = vmatpush1.bf16.msra.mxu0 0
    %186 = vmatprep.subr.bf16.mxu0 0
    %187 = vmatpush1.bf16.msra.mxu0 0
    %188 = vmatprep.subr.bf16.mxu0 0
    %189 = vmatpush1.bf16.msra.mxu0 0
    %190 = vmatprep.subr.bf16.mxu0 0
    %191 = vmatpush1.bf16.msra.mxu0 0
    %192 = vmatprep.subr.bf16.mxu0 0
    %193 = vmatpush1.bf16.msra.mxu0 0
    %194 = vmatprep.subr.bf16.mxu0 0
    %195 = vmatpush1.bf16.msra.mxu0 0
    %196 = vmatprep.subr.bf16.mxu0 0
    %197 = vmatpush1.bf16.msra.mxu0 0
    %198 = vmatprep.subr.bf16.mxu0 0
    %199 = vmatpush1.bf16.msra.mxu0 0
    %200 = vmatprep.subr.bf16.mxu0 0
    %201 = vmatpush1.bf16.msra.mxu0 0
    %202 = vmatprep.subr.bf16.mxu0 0
    %203 = vmatpush1.bf16.msra.mxu0 0
    %204 = vmatprep.subr.bf16.mxu0 0
    %205 = vmatpush1.bf16.msra.mxu0 0
    %206 = vmatprep.mubr.bf16.mxu0 0
    %207 = vmatmul.mubr.bf16.gmra.mrb[0].mxu0 %v172
    %v208 = vpop.f32.mrb[0].mxu0
    %v209 = vadd.f32 0.0, %v208
    %v210 = vpop.f32.mrb[0].mxu0
    %v211 = vpop.f32.mrb[0].mxu0
    %v212 = vpop.f32.mrb[0].mxu0
    %213 = vdwg.mxu0
    %v214 = vadd.f32 %v135, %v209
    %v215 = vmul.f32 %v214, %v162
    %v216 = vtanh.pop %v215
    %v217 = vmul.f32 %v162, %v216
    %v218 = vadd.f32 %v217, %v164
    %220 = vrot.lane.b32.xlu0 %v167, 32
    %v221 = vpop.permute.xlu0 %220
    %v223 = vmul.f32 %v218, %v221
    %225 = vrot.lane.b32.xlu0 %v218, 64
    %v226 = vpop.permute.xlu0 %225
    %v228 = vmul.f32 %v218, %v226
    %230 = vrot.lane.b32.xlu0 %v228, 32
    %v231 = vpop.permute.xlu0 %230
    %v233 = vadd.f32 %v223, %v231
    %v234 = vtanh.pop %v233
    %236 = vrot.lane.b32.xlu0 %v234, 64
    %v237 = vpop.permute.xlu0 %236
    %v239 = vmul.f32 %v218, %v237
    %v240 = vpack.c.bf16 %v239, %v239
    %242 = vrot.lane.b32.xlu0 %v240, 32
    %v243 = vpop.permute.xlu0 %242
    %v245 = vsel %vm170, %v243, 0
    %247 = vmatprep.subr.bf16.mxu0 0
    %248 = vmatpush1.bf16.msra.mxu0 %v144
    %249 = vmatprep.subr.bf16.mxu0 0
    %250 = vmatpush1.bf16.msra.mxu0 %v145
    %251 = vmatprep.subr.bf16.mxu0 0
    %252 = vmatpush1.bf16.msra.mxu0 0
    %253 = vmatprep.subr.bf16.mxu0 0
    %254 = vmatpush1.bf16.msra.mxu0 0
    %255 = vmatprep.subr.bf16.mxu0 0
    %256 = vmatpush1.bf16.msra.mxu0 0
    %257 = vmatprep.subr.bf16.mxu0 0
    %258 = vmatpush1.bf16.msra.mxu0 0
    %259 = vmatprep.subr.bf16.mxu0 0
    %260 = vmatpush1.bf16.msra.mxu0 0
    %261 = vmatprep.subr.bf16.mxu0 0
    %262 = vmatpush1.bf16.msra.mxu0 0
    %263 = vmatprep.subr.bf16.mxu0 0
    %264 = vmatpush1.bf16.msra.mxu0 0
    %265 = vmatprep.subr.bf16.mxu0 0
    %266 = vmatpush1.bf16.msra.mxu0 0
    %267 = vmatprep.subr.bf16.mxu0 0
    %268 = vmatpush1.bf16.msra.mxu0 0
    %269 = vmatprep.subr.bf16.mxu0 0
    %270 = vmatpush1.bf16.msra.mxu0 0
    %271 = vmatprep.subr.bf16.mxu0 0
    %272 = vmatpush1.bf16.msra.mxu0 0
    %273 = vmatprep.subr.bf16.mxu0 0
    %274 = vmatpush1.bf16.msra.mxu0 0
    %275 = vmatprep.subr.bf16.mxu0 0
    %276 = vmatpush1.bf16.msra.mxu0 0
    %277 = vmatprep.subr.bf16.mxu0 0
    %278 = vmatpush1.bf16.msra.mxu0 0
    %279 = vmatprep.mubr.bf16.mxu0 0
    %280 = vmatmul.mubr.bf16.gmra.mrb[0].mxu0 %v245
    %v281 = vpop.f32.mrb[0].mxu0
    %v282 = vadd.f32 0.0, %v281
    %v283 = vpop.f32.mrb[0].mxu0
    %v284 = vpop.f32.mrb[0].mxu0
    %v285 = vpop.f32.mrb[0].mxu0
    %286 = vdwg.mxu0
    %v288 = vrot.slane %v282, 7
    %v290 = vadd.f32 %v135, %v288
    %v292 = vrot.slane %v162, 7
    %v294 = vmul.f32 %v290, %v292
    %v295 = vtanh.pop %v294
    %v297 = vrot.slane %v295, 1
    %v299 = vmul.f32 %v162, %v297
    %v300 = vadd.f32 %v299, %v164
    %v301 = vmul.f32 %v300, %v233
    %303 = vrot.lane.b32.xlu0 %v300, 64
    %v304 = vpop.permute.xlu0 %303
    %v306 = vmul.f32 %v300, %v304
    %308 = vrot.lane.b32.xlu0 %v306, 32
    %v309 = vpop.permute.xlu0 %308
    %v311 = vadd.f32 %v301, %v309
    %v312 = vtanh.pop %v311
    %314 = vrot.lane.b32.xlu0 %v312, 64
    %v315 = vpop.permute.xlu0 %314
    %v317 = vmul.f32 %v300, %v315
    %319 = vrot.lane.b32.xlu0 %v239, 32
    %v320 = vpop.permute.xlu0 %319
    %323 = vrot.lane.b32.xlu0 %v166, 32
    %v324 = vpop.permute.xlu0 %323
    %v326 = vsel %vm170, %v320, %v324
    %v327 = vpack.c.bf16 %v326, %v326
    %v329 = vsel %vm159, %v327, 0
    %331 = vmatprep.subr.bf16.mxu0 0
    %332 = vmatpush1.bf16.msra.mxu0 %v154
    %333 = vmatprep.subr.bf16.mxu0 0
    %334 = vmatpush1.bf16.msra.mxu0 %v155
    %335 = vmatprep.subr.bf16.mxu0 0
    %336 = vmatpush1.bf16.msra.mxu0 %v156
    %337 = vmatprep.subr.bf16.mxu0 0
    %338 = vmatpush1.bf16.msra.mxu0 %v157
    %339 = vmatprep.subr.bf16.mxu0 0
    %340 = vmatpush1.bf16.msra.mxu0 0
    %341 = vmatprep.subr.bf16.mxu0 0
    %342 = vmatpush1.bf16.msra.mxu0 0
    %343 = vmatprep.subr.bf16.mxu0 0
    %344 = vmatpush1.bf16.msra.mxu0 0
    %345 = vmatprep.subr.bf16.mxu0 0
    %346 = vmatpush1.bf16.msra.mxu0 0
    %347 = vmatprep.subr.bf16.mxu0 0
    %348 = vmatpush1.bf16.msra.mxu0 0
    %349 = vmatprep.subr.bf16.mxu0 0
    %350 = vmatpush1.bf16.msra.mxu0 0
    %351 = vmatprep.subr.bf16.mxu0 0
    %352 = vmatpush1.bf16.msra.mxu0 0
    %353 = vmatprep.subr.bf16.mxu0 0
    %354 = vmatpush1.bf16.msra.mxu0 0
    %355 = vmatprep.subr.bf16.mxu0 0
    %356 = vmatpush1.bf16.msra.mxu0 0
    %357 = vmatprep.subr.bf16.mxu0 0
    %358 = vmatpush1.bf16.msra.mxu0 0
    %359 = vmatprep.subr.bf16.mxu0 0
    %360 = vmatpush1.bf16.msra.mxu0 0
    %361 = vmatprep.subr.bf16.mxu0 0
    %362 = vmatpush1.bf16.msra.mxu0 0
    %363 = vmatprep.mubr.bf16.mxu0 0
    %364 = vmatmul.mubr.bf16.gmra.mrb[0].mxu0 %v329
    %v365 = vpop.f32.mrb[0].mxu0
    %v366 = vadd.f32 %v158, %v365
    %v367 = vpop.f32.mrb[0].mxu0
    %v368 = vpop.f32.mrb[0].mxu0
    %v369 = vpop.f32.mrb[0].mxu0
    %370 = vdwg.mxu0
    %v371 = vmul.f32 %v366, %v162
    %v372 = vtanh.pop %v371
    %v373 = vmul.f32 %v162, %v372
    %v374 = vadd.f32 %v373, %v164
    %376 = vrot.lane.b32.xlu0 %v168, 32
    %v377 = vpop.permute.xlu0 %376
    %v379 = vmul.f32 %v374, %v377
    %381 = vrot.lane.b32.xlu0 %v374, 64
    %v382 = vpop.permute.xlu0 %381
    %v384 = vmul.f32 %v374, %v382
    %386 = vrot.lane.b32.xlu0 %v384, 32
    %v387 = vpop.permute.xlu0 %386
    %v389 = vadd.f32 %v379, %v387
    %v390 = vtanh.pop %v389
    %392 = vrot.lane.b32.xlu0 %v390, 64
    %v393 = vpop.permute.xlu0 %392
    %v395 = vmul.f32 %v374, %v393
    %v396 = vpack.c.bf16 %v317, %v317
    %398 = vrot.lane.b32.xlu0 %v396, 32
    %v399 = vpop.permute.xlu0 %398
    %v401 = vsel %vm170, %v399, 0
    %403 = vmatprep.subr.bf16.mxu0 0
    %404 = vmatpush1.bf16.msra.mxu0 %v144
    %405 = vmatprep.subr.bf16.mxu0 0
    %406 = vmatpush1.bf16.msra.mxu0 %v145
    %407 = vmatprep.subr.bf16.mxu0 0
    %408 = vmatpush1.bf16.msra.mxu0 0
    %409 = vmatprep.subr.bf16.mxu0 0
    %410 = vmatpush1.bf16.msra.mxu0 0
    %411 = vmatprep.subr.bf16.mxu0 0
    %412 = vmatpush1.bf16.msra.mxu0 0
    %413 = vmatprep.subr.bf16.mxu0 0
    %414 = vmatpush1.bf16.msra.mxu0 0
    %415 = vmatprep.subr.bf16.mxu0 0
    %416 = vmatpush1.bf16.msra.mxu0 0
    %417 = vmatprep.subr.bf16.mxu0 0
    %418 = vmatpush1.bf16.msra.mxu0 0
    %419 = vmatprep.subr.bf16.mxu0 0
    %420 = vmatpush1.bf16.msra.mxu0 0
    %421 = vmatprep.subr.bf16.mxu0 0
    %422 = vmatpush1.bf16.msra.mxu0 0
    %423 = vmatprep.subr.bf16.mxu0 0
    %424 = vmatpush1.bf16.msra.mxu0 0
    %425 = vmatprep.subr.bf16.mxu0 0
    %426 = vmatpush1.bf16.msra.mxu0 0
    %427 = vmatprep.subr.bf16.mxu0 0
    %428 = vmatpush1.bf16.msra.mxu0 0
    %429 = vmatprep.subr.bf16.mxu0 0
    %430 = vmatpush1.bf16.msra.mxu0 0
    %431 = vmatprep.subr.bf16.mxu0 0
    %432 = vmatpush1.bf16.msra.mxu0 0
    %433 = vmatprep.subr.bf16.mxu0 0
    %434 = vmatpush1.bf16.msra.mxu0 0
    %435 = vmatprep.mubr.bf16.mxu0 0
    %436 = vmatmul.mubr.bf16.gmra.mrb[0].mxu0 %v401
    %v437 = vpop.f32.mrb[0].mxu0
    %v438 = vadd.f32 0.0, %v437
    %v439 = vpop.f32.mrb[0].mxu0
    %v440 = vpop.f32.mrb[0].mxu0
    %v441 = vpop.f32.mrb[0].mxu0
    %442 = vdwg.mxu0
    %v444 = vrot.slane %v438, 6
    %v446 = vadd.f32 %v135, %v444
    %v447 = vrot.slane %v162, 6
    %v449 = vmul.f32 %v446, %v447
    %v450 = vtanh.pop %v449
    %v452 = vrot.slane %v450, 2
    %v454 = vmul.f32 %v162, %v452
    %v455 = vadd.f32 %v454, %v164
    %v456 = vmul.f32 %v455, %v311
    %458 = vrot.lane.b32.xlu0 %v455, 64
    %v459 = vpop.permute.xlu0 %458
    %v461 = vmul.f32 %v455, %v459
    %463 = vrot.lane.b32.xlu0 %v461, 32
    %v464 = vpop.permute.xlu0 %463
    %v466 = vadd.f32 %v456, %v464
    %v467 = vtanh.pop %v466
    %469 = vrot.lane.b32.xlu0 %v467, 64
    %v470 = vpop.permute.xlu0 %469
    %v472 = vmul.f32 %v455, %v470
    %474 = vrot.lane.b32.xlu0 %v317, 32
    %v475 = vpop.permute.xlu0 %474
    %478 = vrot.lane.b32.xlu0 %v395, 64
    %v479 = vpop.permute.xlu0 %478
    %v481 = vsel %vm170, %v475, %v479
    %v482 = vpack.c.bf16 %v481, %v481
    %v484 = vsel %vm159, %v482, 0
    %486 = vmatprep.subr.bf16.mxu0 0
    %487 = vmatpush1.bf16.msra.mxu0 %v154
    %488 = vmatprep.subr.bf16.mxu0 0
    %489 = vmatpush1.bf16.msra.mxu0 %v155
    %490 = vmatprep.subr.bf16.mxu0 0
    %491 = vmatpush1.bf16.msra.mxu0 %v156
    %492 = vmatprep.subr.bf16.mxu0 0
    %493 = vmatpush1.bf16.msra.mxu0 %v157
    %494 = vmatprep.subr.bf16.mxu0 0
    %495 = vmatpush1.bf16.msra.mxu0 0
    %496 = vmatprep.subr.bf16.mxu0 0
    %497 = vmatpush1.bf16.msra.mxu0 0
    %498 = vmatprep.subr.bf16.mxu0 0
    %499 = vmatpush1.bf16.msra.mxu0 0
    %500 = vmatprep.subr.bf16.mxu0 0
    %501 = vmatpush1.bf16.msra.mxu0 0
    %502 = vmatprep.subr.bf16.mxu0 0
    %503 = vmatpush1.bf16.msra.mxu0 0
    %504 = vmatprep.subr.bf16.mxu0 0
    %505 = vmatpush1.bf16.msra.mxu0 0
    %506 = vmatprep.subr.bf16.mxu0 0
    %507 = vmatpush1.bf16.msra.mxu0 0
    %508 = vmatprep.subr.bf16.mxu0 0
    %509 = vmatpush1.bf16.msra.mxu0 0
    %510 = vmatprep.subr.bf16.mxu0 0
    %511 = vmatpush1.bf16.msra.mxu0 0
    %512 = vmatprep.subr.bf16.mxu0 0
    %513 = vmatpush1.bf16.msra.mxu0 0
    %514 = vmatprep.subr.bf16.mxu0 0
    %515 = vmatpush1.bf16.msra.mxu0 0
    %516 = vmatprep.subr.bf16.mxu0 0
    %517 = vmatpush1.bf16.msra.mxu0 0
    %518 = vmatprep.mubr.bf16.mxu0 0
    %519 = vmatmul.mubr.bf16.gmra.mrb[0].mxu0 %v484
    %v520 = vpop.f32.mrb[0].mxu0
    %v521 = vadd.f32 %v158, %v520
    %v522 = vpop.f32.mrb[0].mxu0
    %v523 = vpop.f32.mrb[0].mxu0
    %v524 = vpop.f32.mrb[0].mxu0
    %525 = vdwg.mxu0
    %v526 = vmul.f32 %v521, %v162
    %v527 = vtanh.pop %v526
    %v528 = vmul.f32 %v162, %v527
    %v529 = vadd.f32 %v528, %v164
    %v530 = vmul.f32 %v529, %v389
    %532 = vrot.lane.b32.xlu0 %v529, 64
    %v533 = vpop.permute.xlu0 %532
    %v535 = vmul.f32 %v529, %v533
    %537 = vrot.lane.b32.xlu0 %v535, 32
    %v538 = vpop.permute.xlu0 %537
    %v540 = vadd.f32 %v530, %v538
    %v541 = vtanh.pop %v540
    %543 = vrot.lane.b32.xlu0 %v541, 64
    %v544 = vpop.permute.xlu0 %543
    %v546 = vmul.f32 %v529, %v544
    %v547 = vpack.c.bf16 %v472, %v472
    %549 = vrot.lane.b32.xlu0 %v547, 32
    %v550 = vpop.permute.xlu0 %549
    %v552 = vsel %vm170, %v550, 0
    %554 = vmatprep.subr.bf16.mxu0 0
    %555 = vmatpush1.bf16.msra.mxu0 %v144
    %556 = vmatprep.subr.bf16.mxu0 0
    %557 = vmatpush1.bf16.msra.mxu0 %v145
    %558 = vmatprep.subr.bf16.mxu0 0
    %559 = vmatpush1.bf16.msra.mxu0 0
    %560 = vmatprep.subr.bf16.mxu0 0
    %561 = vmatpush1.bf16.msra.mxu0 0
    %562 = vmatprep.subr.bf16.mxu0 0
    %563 = vmatpush1.bf16.msra.mxu0 0
    %564 = vmatprep.subr.bf16.mxu0 0
    %565 = vmatpush1.bf16.msra.mxu0 0
    %566 = vmatprep.subr.bf16.mxu0 0
    %567 = vmatpush1.bf16.msra.mxu0 0
    %568 = vmatprep.subr.bf16.mxu0 0
    %569 = vmatpush1.bf16.msra.mxu0 0
    %570 = vmatprep.subr.bf16.mxu0 0
    %571 = vmatpush1.bf16.msra.mxu0 0
    %572 = vmatprep.subr.bf16.mxu0 0
    %573 = vmatpush1.bf16.msra.mxu0 0
    %574 = vmatprep.subr.bf16.mxu0 0
    %575 = vmatpush1.bf16.msra.mxu0 0
    %576 = vmatprep.subr.bf16.mxu0 0
    %577 = vmatpush1.bf16.msra.mxu0 0
    %578 = vmatprep.subr.bf16.mxu0 0
    %579 = vmatpush1.bf16.msra.mxu0 0
    %580 = vmatprep.subr.bf16.mxu0 0
    %581 = vmatpush1.bf16.msra.mxu0 0
    %582 = vmatprep.subr.bf16.mxu0 0
    %583 = vmatpush1.bf16.msra.mxu0 0
    %584 = vmatprep.subr.bf16.mxu0 0
    %585 = vmatpush1.bf16.msra.mxu0 0
    %586 = vmatprep.mubr.bf16.mxu0 0
    %587 = vmatmul.mubr.bf16.gmra.mrb[0].mxu0 %v552
    %v588 = vpop.f32.mrb[0].mxu0
    %v589 = vadd.f32 0.0, %v588
    %v590 = vpop.f32.mrb[0].mxu0
    %v591 = vpop.f32.mrb[0].mxu0
    %v592 = vpop.f32.mrb[0].mxu0
    %593 = vdwg.mxu0
    %v595 = vrot.slane %v589, 5
    %v597 = vadd.f32 %v135, %v595
    %v598 = vrot.slane %v162, 5
    %v600 = vmul.f32 %v597, %v598
    %v601 = vtanh.pop %v600
    %v603 = vrot.slane %v601, 3
    %v605 = vmul.f32 %v162, %v603
    %v606 = vadd.f32 %v605, %v164
    %v607 = vmul.f32 %v606, %v466
    %609 = vrot.lane.b32.xlu0 %v606, 64
    %v610 = vpop.permute.xlu0 %609
    %v612 = vmul.f32 %v606, %v610
    %614 = vrot.lane.b32.xlu0 %v612, 32
    %v615 = vpop.permute.xlu0 %614
    %v617 = vadd.f32 %v607, %v615
    %v618 = vtanh.pop %v617
    %620 = vrot.lane.b32.xlu0 %v618, 64
    %v621 = vpop.permute.xlu0 %620
    %v623 = vmul.f32 %v606, %v621
    %625 = vrot.lane.b32.xlu0 %v472, 32
    %v626 = vpop.permute.xlu0 %625
    %629 = vrot.lane.b32.xlu0 %v546, 64
    %v630 = vpop.permute.xlu0 %629
    %v632 = vsel %vm170, %v626, %v630
    %v633 = vpack.c.bf16 %v632, %v632
    %v635 = vsel %vm159, %v633, 0
    %637 = vmatprep.subr.bf16.mxu0 0
    %638 = vmatpush1.bf16.msra.mxu0 %v154
    %639 = vmatprep.subr.bf16.mxu0 0
    %640 = vmatpush1.bf16.msra.mxu0 %v155
    %641 = vmatprep.subr.bf16.mxu0 0
    %642 = vmatpush1.bf16.msra.mxu0 %v156
    %643 = vmatprep.subr.bf16.mxu0 0
    %644 = vmatpush1.bf16.msra.mxu0 %v157
    %645 = vmatprep.subr.bf16.mxu0 0
    %646 = vmatpush1.bf16.msra.mxu0 0
    %647 = vmatprep.subr.bf16.mxu0 0
    %648 = vmatpush1.bf16.msra.mxu0 0
    %649 = vmatprep.subr.bf16.mxu0 0
    %650 = vmatpush1.bf16.msra.mxu0 0
    %651 = vmatprep.subr.bf16.mxu0 0
    %652 = vmatpush1.bf16.msra.mxu0 0
    %653 = vmatprep.subr.bf16.mxu0 0
    %654 = vmatpush1.bf16.msra.mxu0 0
    %655 = vmatprep.subr.bf16.mxu0 0
    %656 = vmatpush1.bf16.msra.mxu0 0
    %657 = vmatprep.subr.bf16.mxu0 0
    %658 = vmatpush1.bf16.msra.mxu0 0
    %659 = vmatprep.subr.bf16.mxu0 0
    %660 = vmatpush1.bf16.msra.mxu0 0
    %661 = vmatprep.subr.bf16.mxu0 0
    %662 = vmatpush1.bf16.msra.mxu0 0
    %663 = vmatprep.subr.bf16.mxu0 0
    %664 = vmatpush1.bf16.msra.mxu0 0
    %665 = vmatprep.subr.bf16.mxu0 0
    %666 = vmatpush1.bf16.msra.mxu0 0
    %667 = vmatprep.subr.bf16.mxu0 0
    %668 = vmatpush1.bf16.msra.mxu0 0
    %669 = vmatprep.mubr.bf16.mxu0 0
    %670 = vmatmul.mubr.bf16.gmra.mrb[0].mxu0 %v635
    %v671 = vpop.f32.mrb[0].mxu0
    %v672 = vadd.f32 %v158, %v671
    %v673 = vpop.f32.mrb[0].mxu0
    %v674 = vpop.f32.mrb[0].mxu0
    %v675 = vpop.f32.mrb[0].mxu0
    %676 = vdwg.mxu0
    %v677 = vmul.f32 %v672, %v162
    %v678 = vtanh.pop %v677
    %v679 = vmul.f32 %v162, %v678
    %v680 = vadd.f32 %v679, %v164
    %v681 = vmul.f32 %v680, %v540
    %683 = vrot.lane.b32.xlu0 %v680, 64
    %v684 = vpop.permute.xlu0 %683
    %v686 = vmul.f32 %v680, %v684
    %688 = vrot.lane.b32.xlu0 %v686, 32
    %v689 = vpop.permute.xlu0 %688
    %v691 = vadd.f32 %v681, %v689
    %v692 = vtanh.pop %v691
    %694 = vrot.lane.b32.xlu0 %v692, 64
    %v695 = vpop.permute.xlu0 %694
    %v697 = vmul.f32 %v680, %v695
    %v698 = vpack.c.bf16 %v623, %v623
    %700 = vrot.lane.b32.xlu0 %v698, 32
    %v701 = vpop.permute.xlu0 %700
    %v703 = vsel %vm170, %v701, 0
    %705 = vmatprep.subr.bf16.mxu0 0
    %706 = vmatpush1.bf16.msra.mxu0 %v144
    %707 = vmatprep.subr.bf16.mxu0 0
    %708 = vmatpush1.bf16.msra.mxu0 %v145
    %709 = vmatprep.subr.bf16.mxu0 0
    %710 = vmatpush1.bf16.msra.mxu0 0
    %711 = vmatprep.subr.bf16.mxu0 0
    %712 = vmatpush1.bf16.msra.mxu0 0
    %713 = vmatprep.subr.bf16.mxu0 0
    %714 = vmatpush1.bf16.msra.mxu0 0
    %715 = vmatprep.subr.bf16.mxu0 0
    %716 = vmatpush1.bf16.msra.mxu0 0
    %717 = vmatprep.subr.bf16.mxu0 0
    %718 = vmatpush1.bf16.msra.mxu0 0
    %719 = vmatprep.subr.bf16.mxu0 0
    %720 = vmatpush1.bf16.msra.mxu0 0
    %721 = vmatprep.subr.bf16.mxu0 0
    %722 = vmatpush1.bf16.msra.mxu0 0
    %723 = vmatprep.subr.bf16.mxu0 0
    %724 = vmatpush1.bf16.msra.mxu0 0
    %725 = vmatprep.subr.bf16.mxu0 0
    %726 = vmatpush1.bf16.msra.mxu0 0
    %727 = vmatprep.subr.bf16.mxu0 0
    %728 = vmatpush1.bf16.msra.mxu0 0
    %729 = vmatprep.subr.bf16.mxu0 0
    %730 = vmatpush1.bf16.msra.mxu0 0
    %731 = vmatprep.subr.bf16.mxu0 0
    %732 = vmatpush1.bf16.msra.mxu0 0
    %733 = vmatprep.subr.bf16.mxu0 0
    %734 = vmatpush1.bf16.msra.mxu0 0
    %735 = vmatprep.subr.bf16.mxu0 0
    %736 = vmatpush1.bf16.msra.mxu0 0
    %737 = vmatprep.mubr.bf16.mxu0 0
    %738 = vmatmul.mubr.bf16.gmra.mrb[0].mxu0 %v703
    %v739 = vpop.f32.mrb[0].mxu0
    %v740 = vadd.f32 0.0, %v739
    %v741 = vpop.f32.mrb[0].mxu0
    %v742 = vpop.f32.mrb[0].mxu0
    %v743 = vpop.f32.mrb[0].mxu0
    %744 = vdwg.mxu0
    %v746 = vrot.slane %v740, 4
    %v748 = vadd.f32 %v135, %v746
    %v749 = vrot.slane %v162, 4
    %v751 = vmul.f32 %v748, %v749
    %v752 = vtanh.pop %v751
    %v754 = vrot.slane %v752, 4
    %v756 = vmul.f32 %v162, %v754
    %v757 = vadd.f32 %v756, %v164
    %v758 = vmul.f32 %v757, %v617
    %760 = vrot.lane.b32.xlu0 %v757, 64
    %v761 = vpop.permute.xlu0 %760
    %v763 = vmul.f32 %v757, %v761
    %765 = vrot.lane.b32.xlu0 %v763, 32
    %v766 = vpop.permute.xlu0 %765
    %v768 = vadd.f32 %v758, %v766
    %v769 = vtanh.pop %v768
    %771 = vrot.lane.b32.xlu0 %v769, 64
    %v772 = vpop.permute.xlu0 %771
    %v774 = vmul.f32 %v757, %v772
    %776 = vrot.lane.b32.xlu0 %v623, 32
    %v777 = vpop.permute.xlu0 %776
    %780 = vrot.lane.b32.xlu0 %v697, 64
    %v781 = vpop.permute.xlu0 %780
    %v783 = vsel %vm170, %v777, %v781
    %v784 = vpack.c.bf16 %v783, %v783
    %v786 = vsel %vm159, %v784, 0
    %788 = vmatprep.subr.bf16.mxu0 0
    %789 = vmatpush1.bf16.msra.mxu0 %v154
    %790 = vmatprep.subr.bf16.mxu0 0
    %791 = vmatpush1.bf16.msra.mxu0 %v155
    %792 = vmatprep.subr.bf16.mxu0 0
    %793 = vmatpush1.bf16.msra.mxu0 %v156
    %794 = vmatprep.subr.bf16.mxu0 0
    %795 = vmatpush1.bf16.msra.mxu0 %v157
    %796 = vmatprep.subr.bf16.mxu0 0
    %797 = vmatpush1.bf16.msra.mxu0 0
    %798 = vmatprep.subr.bf16.mxu0 0
    %799 = vmatpush1.bf16.msra.mxu0 0
    %800 = vmatprep.subr.bf16.mxu0 0
    %801 = vmatpush1.bf16.msra.mxu0 0
    %802 = vmatprep.subr.bf16.mxu0 0
    %803 = vmatpush1.bf16.msra.mxu0 0
    %804 = vmatprep.subr.bf16.mxu0 0
    %805 = vmatpush1.bf16.msra.mxu0 0
    %806 = vmatprep.subr.bf16.mxu0 0
    %807 = vmatpush1.bf16.msra.mxu0 0
    %808 = vmatprep.subr.bf16.mxu0 0
    %809 = vmatpush1.bf16.msra.mxu0 0
    %810 = vmatprep.subr.bf16.mxu0 0
    %811 = vmatpush1.bf16.msra.mxu0 0
    %812 = vmatprep.subr.bf16.mxu0 0
    %813 = vmatpush1.bf16.msra.mxu0 0
    %814 = vmatprep.subr.bf16.mxu0 0
    %815 = vmatpush1.bf16.msra.mxu0 0
    %816 = vmatprep.subr.bf16.mxu0 0
    %817 = vmatpush1.bf16.msra.mxu0 0
    %818 = vmatprep.subr.bf16.mxu0 0
    %819 = vmatpush1.bf16.msra.mxu0 0
    %820 = vmatprep.mubr.bf16.mxu0 0
    %821 = vmatmul.mubr.bf16.gmra.mrb[0].mxu0 %v786
    %v822 = vpop.f32.mrb[0].mxu0
    %v823 = vadd.f32 %v158, %v822
    %v824 = vpop.f32.mrb[0].mxu0
    %v825 = vpop.f32.mrb[0].mxu0
    %v826 = vpop.f32.mrb[0].mxu0
    %827 = vdwg.mxu0
    %v828 = vmul.f32 %v823, %v162
    %v829 = vtanh.pop %v828
    %v830 = vmul.f32 %v162, %v829
    %v831 = vadd.f32 %v830, %v164
    %v832 = vmul.f32 %v831, %v691
    %834 = vrot.lane.b32.xlu0 %v831, 64
    %v835 = vpop.permute.xlu0 %834
    %v837 = vmul.f32 %v831, %v835
    %839 = vrot.lane.b32.xlu0 %v837, 32
    %v840 = vpop.permute.xlu0 %839
    %v842 = vadd.f32 %v832, %v840
    %v843 = vtanh.pop %v842
    %845 = vrot.lane.b32.xlu0 %v843, 64
    %v846 = vpop.permute.xlu0 %845
    %v848 = vmul.f32 %v831, %v846
    %v849 = vpack.c.bf16 %v774, %v774
    %851 = vrot.lane.b32.xlu0 %v849, 32
    %v852 = vpop.permute.xlu0 %851
    %v854 = vsel %vm170, %v852, 0
    %856 = vmatprep.subr.bf16.mxu0 0
    %857 = vmatpush1.bf16.msra.mxu0 %v144
    %858 = vmatprep.subr.bf16.mxu0 0
    %859 = vmatpush1.bf16.msra.mxu0 %v145
    %860 = vmatprep.subr.bf16.mxu0 0
    %861 = vmatpush1.bf16.msra.mxu0 0
    %862 = vmatprep.subr.bf16.mxu0 0
    %863 = vmatpush1.bf16.msra.mxu0 0
    %864 = vmatprep.subr.bf16.mxu0 0
    %865 = vmatpush1.bf16.msra.mxu0 0
    %866 = vmatprep.subr.bf16.mxu0 0
    %867 = vmatpush1.bf16.msra.mxu0 0
    %868 = vmatprep.subr.bf16.mxu0 0
    %869 = vmatpush1.bf16.msra.mxu0 0
    %870 = vmatprep.subr.bf16.mxu0 0
    %871 = vmatpush1.bf16.msra.mxu0 0
    %872 = vmatprep.subr.bf16.mxu0 0
    %873 = vmatpush1.bf16.msra.mxu0 0
    %874 = vmatprep.subr.bf16.mxu0 0
    %875 = vmatpush1.bf16.msra.mxu0 0
    %876 = vmatprep.subr.bf16.mxu0 0
    %877 = vmatpush1.bf16.msra.mxu0 0
    %878 = vmatprep.subr.bf16.mxu0 0
    %879 = vmatpush1.bf16.msra.mxu0 0
    %880 = vmatprep.subr.bf16.mxu0 0
    %881 = vmatpush1.bf16.msra.mxu0 0
    %882 = vmatprep.subr.bf16.mxu0 0
    %883 = vmatpush1.bf16.msra.mxu0 0
    %884 = vmatprep.subr.bf16.mxu0 0
    %885 = vmatpush1.bf16.msra.mxu0 0
    %886 = vmatprep.subr.bf16.mxu0 0
    %887 = vmatpush1.bf16.msra.mxu0 0
    %888 = vmatprep.mubr.bf16.mxu0 0
    %889 = vmatmul.mubr.bf16.gmra.mrb[0].mxu0 %v854
    %v890 = vpop.f32.mrb[0].mxu0
    %v891 = vadd.f32 0.0, %v890
    %v892 = vpop.f32.mrb[0].mxu0
    %v893 = vpop.f32.mrb[0].mxu0
    %v894 = vpop.f32.mrb[0].mxu0
    %895 = vdwg.mxu0
    %v897 = vrot.slane %v891, 3
    %v899 = vadd.f32 %v135, %v897
    %v900 = vrot.slane %v162, 3
    %v902 = vmul.f32 %v899, %v900
    %v903 = vtanh.pop %v902
    %v905 = vrot.slane %v903, 5
    %v907 = vmul.f32 %v162, %v905
    %v908 = vadd.f32 %v907, %v164
    %v909 = vmul.f32 %v908, %v768
    %911 = vrot.lane.b32.xlu0 %v908, 64
    %v912 = vpop.permute.xlu0 %911
    %v914 = vmul.f32 %v908, %v912
    %916 = vrot.lane.b32.xlu0 %v914, 32
    %v917 = vpop.permute.xlu0 %916
    %v919 = vadd.f32 %v909, %v917
    %v920 = vtanh.pop %v919
    %922 = vrot.lane.b32.xlu0 %v920, 64
    %v923 = vpop.permute.xlu0 %922
    %v925 = vmul.f32 %v908, %v923
    %927 = vrot.lane.b32.xlu0 %v774, 32
    %v928 = vpop.permute.xlu0 %927
    %931 = vrot.lane.b32.xlu0 %v848, 64
    %v932 = vpop.permute.xlu0 %931
    %v934 = vsel %vm170, %v928, %v932
    %v935 = vpack.c.bf16 %v934, %v934
    %v937 = vsel %vm159, %v935, 0
    %939 = vmatprep.subr.bf16.mxu0 0
    %940 = vmatpush1.bf16.msra.mxu0 %v154
    %941 = vmatprep.subr.bf16.mxu0 0
    %942 = vmatpush1.bf16.msra.mxu0 %v155
    %943 = vmatprep.subr.bf16.mxu0 0
    %944 = vmatpush1.bf16.msra.mxu0 %v156
    %945 = vmatprep.subr.bf16.mxu0 0
    %946 = vmatpush1.bf16.msra.mxu0 %v157
    %947 = vmatprep.subr.bf16.mxu0 0
    %948 = vmatpush1.bf16.msra.mxu0 0
    %949 = vmatprep.subr.bf16.mxu0 0
    %950 = vmatpush1.bf16.msra.mxu0 0
    %951 = vmatprep.subr.bf16.mxu0 0
    %952 = vmatpush1.bf16.msra.mxu0 0
    %953 = vmatprep.subr.bf16.mxu0 0
    %954 = vmatpush1.bf16.msra.mxu0 0
    %955 = vmatprep.subr.bf16.mxu0 0
    %956 = vmatpush1.bf16.msra.mxu0 0
    %957 = vmatprep.subr.bf16.mxu0 0
    %958 = vmatpush1.bf16.msra.mxu0 0
    %959 = vmatprep.subr.bf16.mxu0 0
    %960 = vmatpush1.bf16.msra.mxu0 0
    %961 = vmatprep.subr.bf16.mxu0 0
    %962 = vmatpush1.bf16.msra.mxu0 0
    %963 = vmatprep.subr.bf16.mxu0 0
    %964 = vmatpush1.bf16.msra.mxu0 0
    %965 = vmatprep.subr.bf16.mxu0 0
    %966 = vmatpush1.bf16.msra.mxu0 0
    %967 = vmatprep.subr.bf16.mxu0 0
    %968 = vmatpush1.bf16.msra.mxu0 0
    %969 = vmatprep.subr.bf16.mxu0 0
    %970 = vmatpush1.bf16.msra.mxu0 0
    %971 = vmatprep.mubr.bf16.mxu0 0
    %972 = vmatmul.mubr.bf16.gmra.mrb[0].mxu0 %v937
    %v973 = vpop.f32.mrb[0].mxu0
    %v974 = vadd.f32 %v158, %v973
    %v975 = vpop.f32.mrb[0].mxu0
    %v976 = vpop.f32.mrb[0].mxu0
    %v977 = vpop.f32.mrb[0].mxu0
    %978 = vdwg.mxu0
    %v979 = vmul.f32 %v974, %v162
    %v980 = vtanh.pop %v979
    %v981 = vmul.f32 %v162, %v980
    %v982 = vadd.f32 %v981, %v164
    %v983 = vmul.f32 %v982, %v842
    %985 = vrot.lane.b32.xlu0 %v982, 64
    %v986 = vpop.permute.xlu0 %985
    %v988 = vmul.f32 %v982, %v986
    %990 = vrot.lane.b32.xlu0 %v988, 32
    %v991 = vpop.permute.xlu0 %990
    %v993 = vadd.f32 %v983, %v991
    %v994 = vtanh.pop %v993
    %996 = vrot.lane.b32.xlu0 %v994, 64
    %v997 = vpop.permute.xlu0 %996
    %v999 = vmul.f32 %v982, %v997
    %v1000 = vpack.c.bf16 %v925, %v925
    %1002 = vrot.lane.b32.xlu0 %v1000, 32
    %v1003 = vpop.permute.xlu0 %1002
    %v1005 = vsel %vm170, %v1003, 0
    %1007 = vmatprep.subr.bf16.mxu0 0
    %1008 = vmatpush1.bf16.msra.mxu0 %v144
    %1009 = vmatprep.subr.bf16.mxu0 0
    %1010 = vmatpush1.bf16.msra.mxu0 %v145
    %1011 = vmatprep.subr.bf16.mxu0 0
    %1012 = vmatpush1.bf16.msra.mxu0 0
    %1013 = vmatprep.subr.bf16.mxu0 0
    %1014 = vmatpush1.bf16.msra.mxu0 0
    %1015 = vmatprep.subr.bf16.mxu0 0
    %1016 = vmatpush1.bf16.msra.mxu0 0
    %1017 = vmatprep.subr.bf16.mxu0 0
    %1018 = vmatpush1.bf16.msra.mxu0 0
    %1019 = vmatprep.subr.bf16.mxu0 0
    %1020 = vmatpush1.bf16.msra.mxu0 0
    %1021 = vmatprep.subr.bf16.mxu0 0
    %1022 = vmatpush1.bf16.msra.mxu0 0
    %1023 = vmatprep.subr.bf16.mxu0 0
    %1024 = vmatpush1.bf16.msra.mxu0 0
    %1025 = vmatprep.subr.bf16.mxu0 0
    %1026 = vmatpush1.bf16.msra.mxu0 0
    %1027 = vmatprep.subr.bf16.mxu0 0
    %1028 = vmatpush1.bf16.msra.mxu0 0
    %1029 = vmatprep.subr.bf16.mxu0 0
    %1030 = vmatpush1.bf16.msra.mxu0 0
    %1031 = vmatprep.subr.bf16.mxu0 0
    %1032 = vmatpush1.bf16.msra.mxu0 0
    %1033 = vmatprep.subr.bf16.mxu0 0
    %1034 = vmatpush1.bf16.msra.mxu0 0
    %1035 = vmatprep.subr.bf16.mxu0 0
    %1036 = vmatpush1.bf16.msra.mxu0 0
    %1037 = vmatprep.subr.bf16.mxu0 0
    %1038 = vmatpush1.bf16.msra.mxu0 0
    %1039 = vmatprep.mubr.bf16.mxu0 0
    %1040 = vmatmul.mubr.bf16.gmra.mrb[0].mxu0 %v1005
    %v1041 = vpop.f32.mrb[0].mxu0
    %v1042 = vadd.f32 0.0, %v1041
    %v1043 = vpop.f32.mrb[0].mxu0
    %v1044 = vpop.f32.mrb[0].mxu0
    %v1045 = vpop.f32.mrb[0].mxu0
    %1046 = vdwg.mxu0
    %v1048 = vrot.slane %v1042, 2
    %v1050 = vadd.f32 %v135, %v1048
    %v1051 = vrot.slane %v162, 2
    %v1053 = vmul.f32 %v1050, %v1051
    %v1054 = vtanh.pop %v1053
    %v1056 = vrot.slane %v1054, 6
    %v1058 = vmul.f32 %v162, %v1056
    %v1059 = vadd.f32 %v1058, %v164
    %v1060 = vmul.f32 %v1059, %v919
    %1062 = vrot.lane.b32.xlu0 %v1059, 64
    %v1063 = vpop.permute.xlu0 %1062
    %v1065 = vmul.f32 %v1059, %v1063
    %1067 = vrot.lane.b32.xlu0 %v1065, 32
    %v1068 = vpop.permute.xlu0 %1067
    %v1070 = vadd.f32 %v1060, %v1068
    %v1071 = vtanh.pop %v1070
    %1073 = vrot.lane.b32.xlu0 %v1071, 64
    %v1074 = vpop.permute.xlu0 %1073
    %v1076 = vmul.f32 %v1059, %v1074
    %1078 = vrot.lane.b32.xlu0 %v925, 32
    %v1079 = vpop.permute.xlu0 %1078
    %1082 = vrot.lane.b32.xlu0 %v999, 64
    %v1083 = vpop.permute.xlu0 %1082
    %v1085 = vsel %vm170, %v1079, %v1083
    %v1086 = vpack.c.bf16 %v1085, %v1085
    %v1088 = vsel %vm159, %v1086, 0
    %1090 = vmatprep.subr.bf16.mxu0 0
    %1091 = vmatpush1.bf16.msra.mxu0 %v154
    %1092 = vmatprep.subr.bf16.mxu0 0
    %1093 = vmatpush1.bf16.msra.mxu0 %v155
    %1094 = vmatprep.subr.bf16.mxu0 0
    %1095 = vmatpush1.bf16.msra.mxu0 %v156
    %1096 = vmatprep.subr.bf16.mxu0 0
    %1097 = vmatpush1.bf16.msra.mxu0 %v157
    %1098 = vmatprep.subr.bf16.mxu0 0
    %1099 = vmatpush1.bf16.msra.mxu0 0
    %1100 = vmatprep.subr.bf16.mxu0 0
    %1101 = vmatpush1.bf16.msra.mxu0 0
    %1102 = vmatprep.subr.bf16.mxu0 0
    %1103 = vmatpush1.bf16.msra.mxu0 0
    %1104 = vmatprep.subr.bf16.mxu0 0
    %1105 = vmatpush1.bf16.msra.mxu0 0
    %1106 = vmatprep.subr.bf16.mxu0 0
    %1107 = vmatpush1.bf16.msra.mxu0 0
    %1108 = vmatprep.subr.bf16.mxu0 0
    %1109 = vmatpush1.bf16.msra.mxu0 0
    %1110 = vmatprep.subr.bf16.mxu0 0
    %1111 = vmatpush1.bf16.msra.mxu0 0
    %1112 = vmatprep.subr.bf16.mxu0 0
    %1113 = vmatpush1.bf16.msra.mxu0 0
    %1114 = vmatprep.subr.bf16.mxu0 0
    %1115 = vmatpush1.bf16.msra.mxu0 0
    %1116 = vmatprep.subr.bf16.mxu0 0
    %1117 = vmatpush1.bf16.msra.mxu0 0
    %1118 = vmatprep.subr.bf16.mxu0 0
    %1119 = vmatpush1.bf16.msra.mxu0 0
    %1120 = vmatprep.subr.bf16.mxu0 0
    %1121 = vmatpush1.bf16.msra.mxu0 0
    %1122 = vmatprep.mubr.bf16.mxu0 0
    %1123 = vmatmul.mubr.bf16.gmra.mrb[0].mxu0 %v1088
    %v1124 = vpop.f32.mrb[0].mxu0
    %v1125 = vadd.f32 %v158, %v1124
    %v1126 = vpop.f32.mrb[0].mxu0
    %v1127 = vpop.f32.mrb[0].mxu0
    %v1128 = vpop.f32.mrb[0].mxu0
    %1129 = vdwg.mxu0
    %v1130 = vmul.f32 %v1125, %v162
    %v1131 = vtanh.pop %v1130
    %v1132 = vmul.f32 %v162, %v1131
    %v1133 = vadd.f32 %v1132, %v164
    %v1134 = vmul.f32 %v1133, %v993
    %1136 = vrot.lane.b32.xlu0 %v1133, 64
    %v1137 = vpop.permute.xlu0 %1136
    %v1139 = vmul.f32 %v1133, %v1137
    %1141 = vrot.lane.b32.xlu0 %v1139, 32
    %v1142 = vpop.permute.xlu0 %1141
    %v1144 = vadd.f32 %v1134, %v1142
    %v1145 = vtanh.pop %v1144
    %1147 = vrot.lane.b32.xlu0 %v1145, 64
    %v1148 = vpop.permute.xlu0 %1147
    %v1150 = vmul.f32 %v1133, %v1148
    %v1151 = vpack.c.bf16 %v1076, %v1076
    %1153 = vrot.lane.b32.xlu0 %v1151, 32
    %v1154 = vpop.permute.xlu0 %1153
    %v1156 = vsel %vm170, %v1154, 0
    %1158 = vmatprep.subr.bf16.mxu0 0
    %1159 = vmatpush1.bf16.msra.mxu0 %v144
    %1160 = vmatprep.subr.bf16.mxu0 0
    %1161 = vmatpush1.bf16.msra.mxu0 %v145
    %1162 = vmatprep.subr.bf16.mxu0 0
    %1163 = vmatpush1.bf16.msra.mxu0 0
    %1164 = vmatprep.subr.bf16.mxu0 0
    %1165 = vmatpush1.bf16.msra.mxu0 0
    %1166 = vmatprep.subr.bf16.mxu0 0
    %1167 = vmatpush1.bf16.msra.mxu0 0
    %1168 = vmatprep.subr.bf16.mxu0 0
    %1169 = vmatpush1.bf16.msra.mxu0 0
    %1170 = vmatprep.subr.bf16.mxu0 0
    %1171 = vmatpush1.bf16.msra.mxu0 0
    %1172 = vmatprep.subr.bf16.mxu0 0
    %1173 = vmatpush1.bf16.msra.mxu0 0
    %1174 = vmatprep.subr.bf16.mxu0 0
    %1175 = vmatpush1.bf16.msra.mxu0 0
    %1176 = vmatprep.subr.bf16.mxu0 0
    %1177 = vmatpush1.bf16.msra.mxu0 0
    %1178 = vmatprep.subr.bf16.mxu0 0
    %1179 = vmatpush1.bf16.msra.mxu0 0
    %1180 = vmatprep.subr.bf16.mxu0 0
    %1181 = vmatpush1.bf16.msra.mxu0 0
    %1182 = vmatprep.subr.bf16.mxu0 0
    %1183 = vmatpush1.bf16.msra.mxu0 0
    %1184 = vmatprep.subr.bf16.mxu0 0
    %1185 = vmatpush1.bf16.msra.mxu0 0
    %1186 = vmatprep.subr.bf16.mxu0 0
    %1187 = vmatpush1.bf16.msra.mxu0 0
    %1188 = vmatprep.subr.bf16.mxu0 0
    %1189 = vmatpush1.bf16.msra.mxu0 0
    %1190 = vmatprep.mubr.bf16.mxu0 0
    %1191 = vmatmul.mubr.bf16.gmra.mrb[0].mxu0 %v1156
    %v1192 = vpop.f32.mrb[0].mxu0
    %v1193 = vadd.f32 0.0, %v1192
    %v1194 = vpop.f32.mrb[0].mxu0
    %v1195 = vpop.f32.mrb[0].mxu0
    %v1196 = vpop.f32.mrb[0].mxu0
    %1197 = vdwg.mxu0
    %v1199 = vrot.slane %v1193, 1
    %v1201 = vadd.f32 %v135, %v1199
    %v1202 = vrot.slane %v162, 1
    %v1204 = vmul.f32 %v1201, %v1202
    %v1205 = vtanh.pop %v1204
    %v1207 = vrot.slane %v1205, 7
    %v1209 = vmul.f32 %v162, %v1207
    %v1210 = vadd.f32 %v1209, %v164
    %v1211 = vmul.f32 %v1210, %v1070
    %1213 = vrot.lane.b32.xlu0 %v1210, 64
    %v1214 = vpop.permute.xlu0 %1213
    %v1216 = vmul.f32 %v1210, %v1214
    %1218 = vrot.lane.b32.xlu0 %v1216, 32
    %v1219 = vpop.permute.xlu0 %1218
    %v1221 = vadd.f32 %v1211, %v1219
    %v1222 = vtanh.pop %v1221
    %1224 = vrot.lane.b32.xlu0 %v1222, 64
    %v1225 = vpop.permute.xlu0 %1224
    %v1227 = vmul.f32 %v1210, %v1225
    %1229 = vrot.lane.b32.xlu0 %v1076, 32
    %v1230 = vpop.permute.xlu0 %1229
    %1233 = vrot.lane.b32.xlu0 %v1150, 64
    %v1234 = vpop.permute.xlu0 %1233
    %v1236 = vsel %vm170, %v1230, %v1234
    %v1237 = vpack.c.bf16 %v1236, %v1236
    %v1239 = vsel %vm159, %v1237, 0
    %1241 = vmatprep.subr.bf16.mxu0 0
    %1242 = vmatpush1.bf16.msra.mxu0 %v154
    %1243 = vmatprep.subr.bf16.mxu0 0
    %1244 = vmatpush1.bf16.msra.mxu0 %v155
    %1245 = vmatprep.subr.bf16.mxu0 0
    %1246 = vmatpush1.bf16.msra.mxu0 %v156
    %1247 = vmatprep.subr.bf16.mxu0 0
    %1248 = vmatpush1.bf16.msra.mxu0 %v157
    %1249 = vmatprep.subr.bf16.mxu0 0
    %1250 = vmatpush1.bf16.msra.mxu0 0
    %1251 = vmatprep.subr.bf16.mxu0 0
    %1252 = vmatpush1.bf16.msra.mxu0 0
    %1253 = vmatprep.subr.bf16.mxu0 0
    %1254 = vmatpush1.bf16.msra.mxu0 0
    %1255 = vmatprep.subr.bf16.mxu0 0
    %1256 = vmatpush1.bf16.msra.mxu0 0
    %1257 = vmatprep.subr.bf16.mxu0 0
    %1258 = vmatpush1.bf16.msra.mxu0 0
    %1259 = vmatprep.subr.bf16.mxu0 0
    %1260 = vmatpush1.bf16.msra.mxu0 0
    %1261 = vmatprep.subr.bf16.mxu0 0
    %1262 = vmatpush1.bf16.msra.mxu0 0
    %1263 = vmatprep.subr.bf16.mxu0 0
    %1264 = vmatpush1.bf16.msra.mxu0 0
    %1265 = vmatprep.subr.bf16.mxu0 0
    %1266 = vmatpush1.bf16.msra.mxu0 0
    %1267 = vmatprep.subr.bf16.mxu0 0
    %1268 = vmatpush1.bf16.msra.mxu0 0
    %1269 = vmatprep.subr.bf16.mxu0 0
    %1270 = vmatpush1.bf16.msra.mxu0 0
    %1271 = vmatprep.subr.bf16.mxu0 0
    %1272 = vmatpush1.bf16.msra.mxu0 0
    %1273 = vmatprep.mubr.bf16.mxu0 0
    %1274 = vmatmul.mubr.bf16.gmra.mrb[0].mxu0 %v1239
    %v1275 = vpop.f32.mrb[0].mxu0
    %v1276 = vadd.f32 %v158, %v1275
    %v1277 = vpop.f32.mrb[0].mxu0
    %v1278 = vpop.f32.mrb[0].mxu0
    %v1279 = vpop.f32.mrb[0].mxu0
    %1280 = vdwg.mxu0
    %v1281 = vmul.f32 %v1276, %v162
    %v1282 = vtanh.pop %v1281
    %v1283 = vmul.f32 %v162, %v1282
    %v1284 = vadd.f32 %v1283, %v164
    %v1285 = vmul.f32 %v1284, %v1144
    %1287 = vrot.lane.b32.xlu0 %v1284, 64
    %v1288 = vpop.permute.xlu0 %1287
    %v1290 = vmul.f32 %v1284, %v1288
    %1292 = vrot.lane.b32.xlu0 %v1290, 32
    %v1293 = vpop.permute.xlu0 %1292
    %v1295 = vadd.f32 %v1285, %v1293
    %v1296 = vtanh.pop %v1295
    %1298 = vrot.lane.b32.xlu0 %v1296, 64
    %v1299 = vpop.permute.xlu0 %1298
    %v1301 = vmul.f32 %v1284, %v1299
    %1303 = vrot.lane.b32.xlu0 %v1227, 32
    %v1304 = vpop.permute.xlu0 %1303
    %1307 = vrot.lane.b32.xlu0 %v1301, 64
    %v1308 = vpop.permute.xlu0 %1307
    %v1310 = vsel %vm170, %v1304, %v1308
    %v1311 = vpack.c.bf16 %v1310, %v1310
    %v1313 = vsel %vm159, %v1311, 0
    %1315 = vmatprep.subr.bf16.mxu0 0
    %1316 = vmatpush1.bf16.msra.mxu0 %v154
    %1317 = vmatprep.subr.bf16.mxu0 0
    %1318 = vmatpush1.bf16.msra.mxu0 %v155
    %1319 = vmatprep.subr.bf16.mxu0 0
    %1320 = vmatpush1.bf16.msra.mxu0 %v156
    %1321 = vmatprep.subr.bf16.mxu0 0
    %1322 = vmatpush1.bf16.msra.mxu0 %v157
    %1323 = vmatprep.subr.bf16.mxu0 0
    %1324 = vmatpush1.bf16.msra.mxu0 0
    %1325 = vmatprep.subr.bf16.mxu0 0
    %1326 = vmatpush1.bf16.msra.mxu0 0
    %1327 = vmatprep.subr.bf16.mxu0 0
    %1328 = vmatpush1.bf16.msra.mxu0 0
    %1329 = vmatprep.subr.bf16.mxu0 0
    %1330 = vmatpush1.bf16.msra.mxu0 0
    %1331 = vmatprep.subr.bf16.mxu0 0
    %1332 = vmatpush1.bf16.msra.mxu0 0
    %1333 = vmatprep.subr.bf16.mxu0 0
    %1334 = vmatpush1.bf16.msra.mxu0 0
    %1335 = vmatprep.subr.bf16.mxu0 0
    %1336 = vmatpush1.bf16.msra.mxu0 0
    %1337 = vmatprep.subr.bf16.mxu0 0
    %1338 = vmatpush1.bf16.msra.mxu0 0
    %1339 = vmatprep.subr.bf16.mxu0 0
    %1340 = vmatpush1.bf16.msra.mxu0 0
    %1341 = vmatprep.subr.bf16.mxu0 0
    %1342 = vmatpush1.bf16.msra.mxu0 0
    %1343 = vmatprep.subr.bf16.mxu0 0
    %1344 = vmatpush1.bf16.msra.mxu0 0
    %1345 = vmatprep.subr.bf16.mxu0 0
    %1346 = vmatpush1.bf16.msra.mxu0 0
    %1347 = vmatprep.mubr.bf16.mxu0 0
    %1348 = vmatmul.mubr.bf16.gmra.mrb[0].mxu0 %v1313
    %v1349 = vpop.f32.mrb[0].mxu0
    %v1350 = vadd.f32 %v158, %v1349
    %v1351 = vpop.f32.mrb[0].mxu0
    %v1352 = vpop.f32.mrb[0].mxu0
    %v1353 = vpop.f32.mrb[0].mxu0
    %1354 = vdwg.mxu0
    %v1355 = vmul.f32 %v1350, %v162
    %v1356 = vtanh.pop %v1355
    %v1357 = vmul.f32 %v162, %v1356
    %v1358 = vadd.f32 %v1357, %v164
    %v1359 = vmul.f32 %v1358, %v1295
    %1361 = vrot.lane.b32.xlu0 %v1358, 64
    %v1362 = vpop.permute.xlu0 %1361
    %v1364 = vmul.f32 %v1358, %v1362
    %1366 = vrot.lane.b32.xlu0 %v1364, 32
    %v1367 = vpop.permute.xlu0 %1366
    %v1369 = vadd.f32 %v1359, %v1367
    %v1370 = vtanh.pop %v1369
    %1372 = vrot.lane.b32.xlu0 %v1370, 64
    %v1373 = vpop.permute.xlu0 %1372
    %v1375 = vmul.f32 %v1358, %v1373
    %v1376 = vrot.slane %v546, 7
    %v1378 = vrot.slane %v697, 6
    %v1380 = vrot.slane %v848, 5
    %v1382 = vrot.slane %v999, 4
    %v1384 = vrot.slane %v1150, 3
    %v1386 = vrot.slane %v1301, 2
    %v1389 = vrot.slane %v1375, 1
    %vm1391 = vcmask 1040384
    %v1392 = vsel %vm1391, %v395, %v1376
    %vm1393 = vcmask 1041408
    %v1394 = vsel %vm1393, %v1392, %v1378
    %vm1395 = vcmask 1042432
    %v1396 = vsel %vm1395, %v1394, %v1380
    %vm1397 = vcmask 1043456
    %v1398 = vsel %vm1397, %v1396, %v1382
    %vm1399 = vcmask 1044480
    %v1400 = vsel %vm1399, %v1398, %v1384
    %vm1401 = vcmask 1045504
    %v1402 = vsel %vm1401, %v1400, %v1386
    %vm1403 = vcmask 1046528
    %v1404 = vsel %vm1403, %v1402, %v1389
    %1406 = vrot.lane.b32.xlu0 %v1404, 32
    %v1407 = vpop.permute.xlu0 %1406
    %1409 = vst.msk [vmem:[#allocation10] sm:$0xff] %vm170, %v1407
    // Predicated region
    $region50: #{tpu_custom_call.1} parent=1 // pred_check
      _
    $region51: #{tpu_custom_call.1} parent=1 // pred_check_branch
      %1411 = sbr.rel (0) target = $region53
    $region52: #{tpu_custom_call.1} parent=1 // pred_region
      %s1413 = ssub.s32 128, 128
      %1414 = vsyncadd [#allocation4], %s1413
      %s1416 = sshll.u32 [#allocation10], 4
      %s1417 = int_to_ptr.vmem [resolvable:$true] %s1416
      %1419 = dma.vmem_to_hbm [thread:$0]  %s1417, 128, %s8, [#allocation4]
    $region53: #{tpu_custom_call.1} parent=1 // pred_fallthru
      _
    // Predicated region
    $region54: #{tpu_custom_call.1} parent=1 // pred_check
      _
    $region55: #{tpu_custom_call.1} parent=1 // pred_check_branch
      %1421 = sbr.rel (0) target = $region57
    $region56: #{tpu_custom_call.1} parent=1 // pred_region
      %1422 = dma.done [#allocation4], 128
    $region57: #{tpu_custom_call.1} parent=1 // pred_fallthru
      _
    %1423 = vsyncpa [#allocation3], 1
    %1424 = vsyncpa [#allocation6], 1
    %1425 = vsyncpa [#allocation9], 1
    %1426 = vsyncpa [#allocation4], 1

</llo_original>
